<compile_context>
chip_gen: v7x
topology: tpu7x:2x2x1
jax: 0.10.0
libtpu: 0.0.40
codegen_flags: <defaults>
</compile_context>

<pallas_src>
import jax
import jax.numpy as jnp
from jax.experimental import pallas as pl
from jax.experimental.pallas import tpu as pltpu

LN_EPS = 1e-5  # torch.nn.LayerNorm default


def _ln_normalize(h):
    """Single-pass LayerNorm normalization (no affine), f32 statistics."""
    d = h.shape[-1]
    s1 = jnp.sum(h, axis=-1, keepdims=True)
    s2 = jnp.sum(h * h, axis=-1, keepdims=True)
    mean = s1 * (1.0 / d)
    var = s2 * (1.0 / d) - mean * mean        # biased variance, f32-safe
    return (h - mean) * jax.lax.rsqrt(var + LN_EPS)


def residual_block_kernel(x_ref, w1_ref, b1_ref, w2_ref, b2_ref,
                          g2_ref, be2_ref, o_ref):
    x = x_ref[...].astype(jnp.float32)                      # (tile_b, in_dim)

    # Linear(in_dim -> hidden_dim): bf16 operands on the MXU, f32 accumulate.
    h = jnp.dot(x.astype(w1_ref.dtype), w1_ref[...],
                preferred_element_type=jnp.float32) + b1_ref[...]
    h = jnp.maximum(h, 0.0)                                 # ReLU

    # LayerNorm(hidden_dim): affine already folded into w2/b2.
    h = _ln_normalize(h)

    # Linear(hidden_dim -> in_dim).
    y = jnp.dot(h.astype(w2_ref.dtype), w2_ref[...],
                preferred_element_type=jnp.float32) + b2_ref[...]

    # LayerNorm(in_dim) with affine.
    y = _ln_normalize(y) * g2_ref[...] + be2_ref[...]

    # Residual add in f32.
    o_ref[...] = (x + y).astype(o_ref.dtype)


def _round_up(x, m):
    return (x + m - 1) // m * m


def residual_block(x, kp, *, tile_b=256, weight_buffers=1):
    """x: (B, in_dim) f32. kp: params from prepare_kernel_params()."""
    B, in_dim = x.shape
    hidden_dim = kp["w1"].shape[1]

    # Row tile: multiple of 8 sublanes (f32); never larger than the padded batch.
    tile_b = max(8, _round_up(min(tile_b, B), 8))
    B_pad = _round_up(B, tile_b)
    if B_pad != B:
        x = jnp.pad(x, ((0, B_pad - B), (0, 0)))
    grid = (B_pad // tile_b,)

    row_spec = pl.BlockSpec((tile_b, in_dim), lambda i: (i, 0))

    def const_spec(shape):
        # Grid-invariant operand: constant index_map; optionally single-buffered.
        if weight_buffers is None:
            return pl.BlockSpec(shape, lambda i: (0, 0))
        return pl.BlockSpec(shape, lambda i: (0, 0),
                            pipeline_mode=pl.Buffered(weight_buffers))

    # VMEM budget: double-buffered x/out row tiles + weight buffers + f32
    # intermediate, with headroom; clamp to [32, 64] MiB (v7x physical = 64 MiB/TC).
    w_bytes = jnp.dtype(kp["w1"].dtype).itemsize
    n_wbuf = 2 if weight_buffers is None else weight_buffers
    vmem = (2 * 2 * tile_b * in_dim * 4                               # x + out, 2 bufs each
            + n_wbuf * (in_dim * hidden_dim + hidden_dim * in_dim) * w_bytes
            + 4 * tile_b * hidden_dim                                 # f32 intermediate h
            + (1 << 20))                                              # small operands / slack
    vmem_limit = int(min(max(int(vmem * 1.3), 32 * 1024 * 1024), 64 * 1024 * 1024))

    out = pl.pallas_call(
        residual_block_kernel,
        out_shape=jax.ShapeDtypeStruct((B_pad, in_dim), x.dtype),
        grid_spec=pltpu.PrefetchScalarGridSpec(
            num_scalar_prefetch=0,
            grid=grid,
            in_specs=[
                row_spec,                              # x row tile
                const_spec((in_dim, hidden_dim)),      # w1 (pre-transposed, bf16)
                const_spec((1, hidden_dim)),           # b1
                const_spec((hidden_dim, in_dim)),      # w2 (LN1 affine folded, bf16)
                const_spec((1, in_dim)),               # b2 (LN1 affine folded)
                const_spec((1, in_dim)),               # ln2 gamma
                const_spec((1, in_dim)),               # ln2 beta
            ],
            out_specs=row_spec,
        ),
        compiler_params=pltpu.CompilerParams(
            dimension_semantics=("parallel",),
            vmem_limit_bytes=vmem_limit),
    )(x, kp["w1"], kp["b1"], kp["w2"], kp["b2"], kp["g2"], kp["be2"])
    return out[:B]


# ----------------------------- parameters ------------------------------------

def init_module_params(key, in_dim, hidden_dim):
    """Parameters in PyTorch layout/semantics (all f32).
    Linear weight: (out_features, in_features); LayerNorm gamma/beta over last dim.
    Non-trivial gamma/beta so the LN1-affine folding is actually exercised."""
    ks = jax.random.split(key, 8)
    lim1 = 1.0 / jnp.sqrt(in_dim)
    lim2 = 1.0 / jnp.sqrt(hidden_dim)
    u = lambda k, shape, lim: jax.random.uniform(k, shape, jnp.float32, -lim, lim)
    return {
        "w1": u(ks[0], (hidden_dim, in_dim), lim1),
        "b1": u(ks[1], (hidden_dim,), lim1),
        "g1": 1.0 + 0.1 * jax.random.normal(ks[2], (hidden_dim,), jnp.float32),
        "be1": 0.1 * jax.random.normal(ks[3], (hidden_dim,), jnp.float32),
        "w2": u(ks[4], (in_dim, hidden_dim), lim2),
        "b2": u(ks[5], (in_dim,), lim2),
        "g2": 1.0 + 0.1 * jax.random.normal(ks[6], (in_dim,), jnp.float32),
        "be2": 0.1 * jax.random.normal(ks[7], (in_dim,), jnp.float32),
    }


def prepare_kernel_params(p, weights_dtype=jnp.bfloat16):
    """One-time host transform into the kernel's layout:
      * weights pre-transposed to (in_features, out_features) so the kernel does x @ W,
      * LN1's affine folded into the second Linear:
          (n * g1 + be1) @ W2^T + b2 == n @ (g1[:, None] * W2^T) + (be1 @ W2^T + b2),
      * matmul weights cast to bf16 (MXU-native); all vectors kept f32 as (1, dim)."""
    w1_t = p["w1"].T                                    # (in_dim, hidden_dim)
    w2_t = p["w2"].T                                    # (hidden_dim, in_dim)
    w2_f = p["g1"][:, None] * w2_t                      # fold gamma1 (in f32, then cast)
    b2_f = p["be1"] @ w2_t + p["b2"]                    # fold beta1
    return {
        "w1": w1_t.astype(weights_dtype),
        "b1": p["b1"].reshape(1, -1).astype(jnp.float32),
        "w2": w2_f.astype(weights_dtype),
        "b2": b2_f.reshape(1, -1).astype(jnp.float32),
        "g2": p["g2"].reshape(1, -1).astype(jnp.float32),
        "be2": p["be2"].reshape(1, -1).astype(jnp.float32),
    }


# ----------------------------- references ------------------------------------

def _layernorm_ref(h, gamma, beta):
    mean = jnp.mean(h, axis=-1, keepdims=True)
    var = jnp.mean((h - mean) ** 2, axis=-1, keepdims=True)
    return (h - mean) * jax.lax.rsqrt(var + LN_EPS) * gamma + beta


def residual_block_ref_f32(x, p):
    """Exact PyTorch-semantics forward (all f32) from the module params."""
    h = jnp.maximum(x @ p["w1"].T + p["b1"], 0.0)
    h = _layernorm_ref(h, p["g1"], p["be1"])
    y = h @ p["w2"].T + p["b2"]
    y = _layernorm_ref(y, p["g2"], p["be2"])
    return x + y


def residual_block_ref_matched(x, kp):
    """Pure-JAX reference at the kernel's exact precision (bf16 matmuls, f32 LN)."""
    h = jnp.dot(x.astype(kp["w1"].dtype), kp["w1"],
                preferred_element_type=jnp.float32) + kp["b1"]
    h = jnp.maximum(h, 0.0)
    h = _ln_normalize(h)
    y = jnp.dot(h.astype(kp["w2"].dtype), kp["w2"],
                preferred_element_type=jnp.float32) + kp["b2"]
    y = _ln_normalize(y) * kp["g2"] + kp["be2"]
    return x + y


if __name__ == "__main__":
    B, in_dim, hidden_dim = 32, 128, 256     # small but lane/sublane-aligned shapes
    key = jax.random.PRNGKey(0)
    kx, kparam = jax.random.split(key)
    x = jax.random.normal(kx, (B, in_dim), jnp.float32)

    mp = init_module_params(kparam, in_dim, hidden_dim)
    kp = prepare_kernel_params(mp)

    # tile_b=8 gives a 4-step grid even at this tiny demo size (exercises the
    # pipelined / megacore-shardable path); use tile_b=256-512 for real batches.
    try:
        out = residual_block(x, kp, tile_b=8, weight_buffers=1)
    except Exception:
        # Fallback if this JAX build rejects single-buffered pipeline_mode on inputs.
        out = residual_block(x, kp, tile_b=8, weight_buffers=None)
    out = jax.block_until_ready(out)

    assert out.shape == (B, in_dim)

    # Tight check vs a pure-JAX reference at matched precision (bf16 matmuls, f32 LN).
    ref_m = residual_block_ref_matched(x, kp)
    assert jnp.allclose(out, ref_m, atol=1e-3, rtol=1e-3), "mismatch vs matched-precision reference"

    # Loose check vs the exact f32 module semantics (bf16 weight quantization noise only).
    ref_f32 = residual_block_ref_f32(x, mp)
    assert float(jnp.max(jnp.abs(out - ref_f32))) < 0.15, "drifted from f32 module semantics"

    print("KERNEL_OK")
</pallas_src>

<mosaic_0001>
module attributes {stable_mosaic.version = 11 : i64} {
  func.func @residual_block_kernel(%arg0: i32, %arg1: memref<8x128xf32, #tpu.memory_space<vmem>>, %arg2: memref<128x256xbf16, #tpu.memory_space<vmem>>, %arg3: memref<1x256xf32, #tpu.memory_space<vmem>>, %arg4: memref<256x128xbf16, #tpu.memory_space<vmem>>, %arg5: memref<1x128xf32, #tpu.memory_space<vmem>>, %arg6: memref<1x128xf32, #tpu.memory_space<vmem>>, %arg7: memref<1x128xf32, #tpu.memory_space<vmem>>, %arg8: memref<8x128xf32, #tpu.memory_space<vmem>>) attributes {dimension_semantics = [#tpu.dimension_semantics<parallel>], iteration_bounds = array<i64: 4>, scalar_prefetch = 0 : i64, scratch_operands = 0 : i64, tpu.core_type = #tpu.core_type<tc>, window_params = [{transform_indices = @transform_0, window_bounds = array<i64: 8, 128>}, {pipeline_mode = #tpu.pipeline_mode<synchronous>, transform_indices = @transform_1, window_bounds = array<i64: 128, 256>}, {pipeline_mode = #tpu.pipeline_mode<synchronous>, transform_indices = @transform_2, window_bounds = array<i64: 1, 256>}, {pipeline_mode = #tpu.pipeline_mode<synchronous>, transform_indices = @transform_3, window_bounds = array<i64: 256, 128>}, {pipeline_mode = #tpu.pipeline_mode<synchronous>, transform_indices = @transform_4, window_bounds = array<i64: 1, 128>}, {pipeline_mode = #tpu.pipeline_mode<synchronous>, transform_indices = @transform_5, window_bounds = array<i64: 1, 128>}, {pipeline_mode = #tpu.pipeline_mode<synchronous>, transform_indices = @transform_6, window_bounds = array<i64: 1, 128>}, {transform_indices = @transform_7, window_bounds = array<i64: 8, 128>}]} {
    %c0 = arith.constant 0 : index
    %c0_0 = arith.constant 0 : index
    %0 = vector.load %arg1[%c0, %c0_0] : memref<8x128xf32, #tpu.memory_space<vmem>>, vector<8x128xf32>
    %1 = arith.truncf %0 : vector<8x128xf32> to vector<8x128xbf16>
    %c0_1 = arith.constant 0 : index
    %c0_2 = arith.constant 0 : index
    %2 = vector.load %arg2[%c0_1, %c0_2] : memref<128x256xbf16, #tpu.memory_space<vmem>>, vector<128x256xbf16>
    %cst = arith.constant dense<0.000000e+00> : vector<8x256xf32>
    %3 = tpu.matmul %1, %2, %cst {dimension_numbers = #tpu.dot_dimension_numbers<[1], [0], [0], [1], [0, 0, 1, 1], [], []>} : vector<8x128xbf16>, vector<128x256xbf16>, vector<8x256xf32> -> vector<8x256xf32>
    %c0_3 = arith.constant 0 : index
    %c0_4 = arith.constant 0 : index
    %4 = vector.load %arg3[%c0_3, %c0_4] : memref<1x256xf32, #tpu.memory_space<vmem>>, vector<1x256xf32>
    %5 = vector.broadcast %4 : vector<1x256xf32> to vector<8x256xf32>
    %6 = arith.addf %3, %5 : vector<8x256xf32>
    %cst_5 = arith.constant 0.000000e+00 : f32
    %7 = vector.broadcast %cst_5 : f32 to vector<8x256xf32>
    %8 = arith.maximumf %6, %7 : vector<8x256xf32>
    %cst_6 = arith.constant dense<0.000000e+00> : vector<8xf32>
    %9 = vector.multi_reduction <add>, %8, %cst_6 [1] : vector<8x256xf32> to vector<8xf32>
    %10 = vector.shape_cast %9 : vector<8xf32> to vector<8x1xf32>
    %11 = arith.mulf %8, %8 : vector<8x256xf32>
    %cst_7 = arith.constant dense<0.000000e+00> : vector<8xf32>
    %12 = vector.multi_reduction <add>, %11, %cst_7 [1] : vector<8x256xf32> to vector<8xf32>
    %13 = vector.shape_cast %12 : vector<8xf32> to vector<8x1xf32>
    %cst_8 = arith.constant 3.906250e-03 : f32
    %14 = vector.broadcast %cst_8 : f32 to vector<8x1xf32>
    %15 = arith.mulf %10, %14 : vector<8x1xf32>
    %cst_9 = arith.constant 3.906250e-03 : f32
    %16 = vector.broadcast %cst_9 : f32 to vector<8x1xf32>
    %17 = arith.mulf %13, %16 : vector<8x1xf32>
    %18 = arith.mulf %15, %15 : vector<8x1xf32>
    %19 = arith.subf %17, %18 : vector<8x1xf32>
    %20 = vector.broadcast %15 : vector<8x1xf32> to vector<8x256xf32>
    %21 = arith.subf %8, %20 : vector<8x256xf32>
    %cst_10 = arith.constant 9.99999974E-6 : f32
    %22 = vector.broadcast %cst_10 : f32 to vector<8x1xf32>
    %23 = arith.addf %19, %22 : vector<8x1xf32>
    %24 = math.rsqrt %23 : vector<8x1xf32>
    %25 = vector.broadcast %24 : vector<8x1xf32> to vector<8x256xf32>
    %26 = arith.mulf %21, %25 : vector<8x256xf32>
    %27 = arith.truncf %26 : vector<8x256xf32> to vector<8x256xbf16>
    %c0_11 = arith.constant 0 : index
    %c0_12 = arith.constant 0 : index
    %28 = vector.load %arg4[%c0_11, %c0_12] : memref<256x128xbf16, #tpu.memory_space<vmem>>, vector<256x128xbf16>
    %cst_13 = arith.constant dense<0.000000e+00> : vector<8x128xf32>
    %29 = tpu.matmul %27, %28, %cst_13 {dimension_numbers = #tpu.dot_dimension_numbers<[1], [0], [0], [1], [0, 0, 1, 1], [], []>} : vector<8x256xbf16>, vector<256x128xbf16>, vector<8x128xf32> -> vector<8x128xf32>
    %c0_14 = arith.constant 0 : index
    %c0_15 = arith.constant 0 : index
    %30 = vector.load %arg5[%c0_14, %c0_15] : memref<1x128xf32, #tpu.memory_space<vmem>>, vector<1x128xf32>
    %31 = vector.broadcast %30 : vector<1x128xf32> to vector<8x128xf32>
    %32 = arith.addf %29, %31 : vector<8x128xf32>
    %cst_16 = arith.constant dense<0.000000e+00> : vector<8xf32>
    %33 = vector.multi_reduction <add>, %32, %cst_16 [1] : vector<8x128xf32> to vector<8xf32>
    %34 = vector.shape_cast %33 : vector<8xf32> to vector<8x1xf32>
    %35 = arith.mulf %32, %32 : vector<8x128xf32>
    %cst_17 = arith.constant dense<0.000000e+00> : vector<8xf32>
    %36 = vector.multi_reduction <add>, %35, %cst_17 [1] : vector<8x128xf32> to vector<8xf32>
    %37 = vector.shape_cast %36 : vector<8xf32> to vector<8x1xf32>
    %cst_18 = arith.constant 7.812500e-03 : f32
    %38 = vector.broadcast %cst_18 : f32 to vector<8x1xf32>
    %39 = arith.mulf %34, %38 : vector<8x1xf32>
    %cst_19 = arith.constant 7.812500e-03 : f32
    %40 = vector.broadcast %cst_19 : f32 to vector<8x1xf32>
    %41 = arith.mulf %37, %40 : vector<8x1xf32>
    %42 = arith.mulf %39, %39 : vector<8x1xf32>
    %43 = arith.subf %41, %42 : vector<8x1xf32>
    %44 = vector.broadcast %39 : vector<8x1xf32> to vector<8x128xf32>
    %45 = arith.subf %32, %44 : vector<8x128xf32>
    %cst_20 = arith.constant 9.99999974E-6 : f32
    %46 = vector.broadcast %cst_20 : f32 to vector<8x1xf32>
    %47 = arith.addf %43, %46 : vector<8x1xf32>
    %48 = math.rsqrt %47 : vector<8x1xf32>
    %49 = vector.broadcast %48 : vector<8x1xf32> to vector<8x128xf32>
    %50 = arith.mulf %45, %49 : vector<8x128xf32>
    %c0_21 = arith.constant 0 : index
    %c0_22 = arith.constant 0 : index
    %51 = vector.load %arg6[%c0_21, %c0_22] : memref<1x128xf32, #tpu.memory_space<vmem>>, vector<1x128xf32>
    %52 = vector.broadcast %51 : vector<1x128xf32> to vector<8x128xf32>
    %53 = arith.mulf %50, %52 : vector<8x128xf32>
    %c0_23 = arith.constant 0 : index
    %c0_24 = arith.constant 0 : index
    %54 = vector.load %arg7[%c0_23, %c0_24] : memref<1x128xf32, #tpu.memory_space<vmem>>, vector<1x128xf32>
    %55 = vector.broadcast %54 : vector<1x128xf32> to vector<8x128xf32>
    %56 = arith.addf %53, %55 : vector<8x128xf32>
    %57 = arith.addf %0, %56 : vector<8x128xf32>
    %c0_25 = arith.constant 0 : index
    %c0_26 = arith.constant 0 : index
    %58 = vector.load %arg8[%c0_25, %c0_26] : memref<8x128xf32, #tpu.memory_space<vmem>>, vector<8x128xf32>
    tpu.vector_store %arg8[%c0_25, %c0_26], %57 {strides = array<i32>} : memref<8x128xf32, #tpu.memory_space<vmem>>, vector<8x128xf32>,
    return
  }
  func.func @transform_0(%arg0: i32) -> (i32, i32) {
    %c0_i32 = arith.constant 0 : i32
    %c0_i32_0 = arith.constant 0 : i32
    return %arg0, %c0_i32 : i32, i32
  }
  func.func @transform_1(%arg0: i32) -> (i32, i32) {
    %c0_i32 = arith.constant 0 : i32
    %c0_i32_0 = arith.constant 0 : i32
    %c0_i32_1 = arith.constant 0 : i32
    return %c0_i32, %c0_i32_0 : i32, i32
  }
  func.func @transform_2(%arg0: i32) -> (i32, i32) {
    %c0_i32 = arith.constant 0 : i32
    %c0_i32_0 = arith.constant 0 : i32
    %c0_i32_1 = arith.constant 0 : i32
    return %c0_i32, %c0_i32_0 : i32, i32
  }
  func.func @transform_3(%arg0: i32) -> (i32, i32) {
    %c0_i32 = arith.constant 0 : i32
    %c0_i32_0 = arith.constant 0 : i32
    %c0_i32_1 = arith.constant 0 : i32
    return %c0_i32, %c0_i32_0 : i32, i32
  }
  func.func @transform_4(%arg0: i32) -> (i32, i32) {
    %c0_i32 = arith.constant 0 : i32
    %c0_i32_0 = arith.constant 0 : i32
    %c0_i32_1 = arith.constant 0 : i32
    return %c0_i32, %c0_i32_0 : i32, i32
  }
  func.func @transform_5(%arg0: i32) -> (i32, i32) {
    %c0_i32 = arith.constant 0 : i32
    %c0_i32_0 = arith.constant 0 : i32
    %c0_i32_1 = arith.constant 0 : i32
    return %c0_i32, %c0_i32_0 : i32, i32
  }
  func.func @transform_6(%arg0: i32) -> (i32, i32) {
    %c0_i32 = arith.constant 0 : i32
    %c0_i32_0 = arith.constant 0 : i32
    %c0_i32_1 = arith.constant 0 : i32
    return %c0_i32, %c0_i32_0 : i32, i32
  }
  func.func @transform_7(%arg0: i32) -> (i32, i32) {
    %c0_i32 = arith.constant 0 : i32
    %c0_i32_0 = arith.constant 0 : i32
    return %arg0, %c0_i32 : i32, i32
  }
}

module attributes {stable_mosaic.version = 11 : i64} {
  func.func @residual_block_kernel(%arg0: i32, %arg1: memref<8x128xf32, #tpu.memory_space<vmem>>, %arg2: memref<128x256xbf16, #tpu.memory_space<vmem>>, %arg3: memref<1x256xf32, #tpu.memory_space<vmem>>, %arg4: memref<256x128xbf16, #tpu.memory_space<vmem>>, %arg5: memref<1x128xf32, #tpu.memory_space<vmem>>, %arg6: memref<1x128xf32, #tpu.memory_space<vmem>>, %arg7: memref<1x128xf32, #tpu.memory_space<vmem>>, %arg8: memref<8x128xf32, #tpu.memory_space<vmem>>) attributes {dimension_semantics = [#tpu.dimension_semantics<parallel>], iteration_bounds = array<i64: 4>, scalar_prefetch = 0 : i64, scratch_operands = 0 : i64, tpu.core_type = #tpu.core_type<tc>, window_params = [{transform_indices = @transform_0, window_bounds = array<i64: 8, 128>}, {pipeline_mode = #tpu.pipeline_mode<synchronous>, transform_indices = @transform_1, window_bounds = array<i64: 128, 256>}, {pipeline_mode = #tpu.pipeline_mode<synchronous>, transform_indices = @transform_2, window_bounds = array<i64: 1, 256>}, {pipeline_mode = #tpu.pipeline_mode<synchronous>, transform_indices = @transform_3, window_bounds = array<i64: 256, 128>}, {pipeline_mode = #tpu.pipeline_mode<synchronous>, transform_indices = @transform_4, window_bounds = array<i64: 1, 128>}, {pipeline_mode = #tpu.pipeline_mode<synchronous>, transform_indices = @transform_5, window_bounds = array<i64: 1, 128>}, {pipeline_mode = #tpu.pipeline_mode<synchronous>, transform_indices = @transform_6, window_bounds = array<i64: 1, 128>}, {transform_indices = @transform_7, window_bounds = array<i64: 8, 128>}]} {
    %c0 = arith.constant 0 : index
    %c0_0 = arith.constant 0 : index
    %0 = vector.load %arg1[%c0, %c0_0] : memref<8x128xf32, #tpu.memory_space<vmem>>, vector<8x128xf32>
    %1 = arith.truncf %0 : vector<8x128xf32> to vector<8x128xbf16>
    %c0_1 = arith.constant 0 : index
    %c0_2 = arith.constant 0 : index
    %2 = vector.load %arg2[%c0_1, %c0_2] : memref<128x256xbf16, #tpu.memory_space<vmem>>, vector<128x256xbf16>
    %cst = arith.constant dense<0.000000e+00> : vector<8x256xf32>
    %3 = tpu.matmul %1, %2, %cst {dimension_numbers = #tpu.dot_dimension_numbers<[1], [0], [0], [1], [0, 0, 1, 1], [], []>} : vector<8x128xbf16>, vector<128x256xbf16>, vector<8x256xf32> -> vector<8x256xf32>
    %c0_3 = arith.constant 0 : index
    %c0_4 = arith.constant 0 : index
    %4 = vector.load %arg3[%c0_3, %c0_4] : memref<1x256xf32, #tpu.memory_space<vmem>>, vector<1x256xf32>
    %5 = vector.broadcast %4 : vector<1x256xf32> to vector<8x256xf32>
    %6 = arith.addf %3, %5 : vector<8x256xf32>
    %cst_5 = arith.constant 0.000000e+00 : f32
    %7 = vector.broadcast %cst_5 : f32 to vector<8x256xf32>
    %8 = arith.maximumf %6, %7 : vector<8x256xf32>
    %cst_6 = arith.constant dense<0.000000e+00> : vector<8xf32>
    %9 = vector.multi_reduction <add>, %8, %cst_6 [1] : vector<8x256xf32> to vector<8xf32>
    %10 = vector.shape_cast %9 : vector<8xf32> to vector<8x1xf32>
    %11 = arith.mulf %8, %8 : vector<8x256xf32>
    %cst_7 = arith.constant dense<0.000000e+00> : vector<8xf32>
    %12 = vector.multi_reduction <add>, %11, %cst_7 [1] : vector<8x256xf32> to vector<8xf32>
    %13 = vector.shape_cast %12 : vector<8xf32> to vector<8x1xf32>
    %cst_8 = arith.constant 3.906250e-03 : f32
    %14 = vector.broadcast %cst_8 : f32 to vector<8x1xf32>
    %15 = arith.mulf %10, %14 : vector<8x1xf32>
    %cst_9 = arith.constant 3.906250e-03 : f32
    %16 = vector.broadcast %cst_9 : f32 to vector<8x1xf32>
    %17 = arith.mulf %13, %16 : vector<8x1xf32>
    %18 = arith.mulf %15, %15 : vector<8x1xf32>
    %19 = arith.subf %17, %18 : vector<8x1xf32>
    %20 = vector.broadcast %15 : vector<8x1xf32> to vector<8x256xf32>
    %21 = arith.subf %8, %20 : vector<8x256xf32>
    %cst_10 = arith.constant 9.99999974E-6 : f32
    %22 = vector.broadcast %cst_10 : f32 to vector<8x1xf32>
    %23 = arith.addf %19, %22 : vector<8x1xf32>
    %24 = math.rsqrt %23 : vector<8x1xf32>
    %25 = vector.broadcast %24 : vector<8x1xf32> to vector<8x256xf32>
    %26 = arith.mulf %21, %25 : vector<8x256xf32>
    %27 = arith.truncf %26 : vector<8x256xf32> to vector<8x256xbf16>
    %c0_11 = arith.constant 0 : index
    %c0_12 = arith.constant 0 : index
    %28 = vector.load %arg4[%c0_11, %c0_12] : memref<256x128xbf16, #tpu.memory_space<vmem>>, vector<256x128xbf16>
    %cst_13 = arith.constant dense<0.000000e+00> : vector<8x128xf32>
    %29 = tpu.matmul %27, %28, %cst_13 {dimension_numbers = #tpu.dot_dimension_numbers<[1], [0], [0], [1], [0, 0, 1, 1], [], []>} : vector<8x256xbf16>, vector<256x128xbf16>, vector<8x128xf32> -> vector<8x128xf32>
    %c0_14 = arith.constant 0 : index
    %c0_15 = arith.constant 0 : index
    %30 = vector.load %arg5[%c0_14, %c0_15] : memref<1x128xf32, #tpu.memory_space<vmem>>, vector<1x128xf32>
    %31 = vector.broadcast %30 : vector<1x128xf32> to vector<8x128xf32>
    %32 = arith.addf %29, %31 : vector<8x128xf32>
    %cst_16 = arith.constant dense<0.000000e+00> : vector<8xf32>
    %33 = vector.multi_reduction <add>, %32, %cst_16 [1] : vector<8x128xf32> to vector<8xf32>
    %34 = vector.shape_cast %33 : vector<8xf32> to vector<8x1xf32>
    %35 = arith.mulf %32, %32 : vector<8x128xf32>
    %cst_17 = arith.constant dense<0.000000e+00> : vector<8xf32>
    %36 = vector.multi_reduction <add>, %35, %cst_17 [1] : vector<8x128xf32> to vector<8xf32>
    %37 = vector.shape_cast %36 : vector<8xf32> to vector<8x1xf32>
    %cst_18 = arith.constant 7.812500e-03 : f32
    %38 = vector.broadcast %cst_18 : f32 to vector<8x1xf32>
    %39 = arith.mulf %34, %38 : vector<8x1xf32>
    %cst_19 = arith.constant 7.812500e-03 : f32
    %40 = vector.broadcast %cst_19 : f32 to vector<8x1xf32>
    %41 = arith.mulf %37, %40 : vector<8x1xf32>
    %42 = arith.mulf %39, %39 : vector<8x1xf32>
    %43 = arith.subf %41, %42 : vector<8x1xf32>
    %44 = vector.broadcast %39 : vector<8x1xf32> to vector<8x128xf32>
    %45 = arith.subf %32, %44 : vector<8x128xf32>
    %cst_20 = arith.constant 9.99999974E-6 : f32
    %46 = vector.broadcast %cst_20 : f32 to vector<8x1xf32>
    %47 = arith.addf %43, %46 : vector<8x1xf32>
    %48 = math.rsqrt %47 : vector<8x1xf32>
    %49 = vector.broadcast %48 : vector<8x1xf32> to vector<8x128xf32>
    %50 = arith.mulf %45, %49 : vector<8x128xf32>
    %c0_21 = arith.constant 0 : index
    %c0_22 = arith.constant 0 : index
    %51 = vector.load %arg6[%c0_21, %c0_22] : memref<1x128xf32, #tpu.memory_space<vmem>>, vector<1x128xf32>
    %52 = vector.broadcast %51 : vector<1x128xf32> to vector<8x128xf32>
    %53 = arith.mulf %50, %52 : vector<8x128xf32>
    %c0_23 = arith.constant 0 : index
    %c0_24 = arith.constant 0 : index
    %54 = vector.load %arg7[%c0_23, %c0_24] : memref<1x128xf32, #tpu.memory_space<vmem>>, vector<1x128xf32>
    %55 = vector.broadcast %54 : vector<1x128xf32> to vector<8x128xf32>
    %56 = arith.addf %53, %55 : vector<8x128xf32>
    %57 = arith.addf %0, %56 : vector<8x128xf32>
    %c0_25 = arith.constant 0 : index
    %c0_26 = arith.constant 0 : index
    %58 = vector.load %arg8[%c0_25, %c0_26] : memref<8x128xf32, #tpu.memory_space<vmem>>, vector<8x128xf32>
    tpu.vector_store %arg8[%c0_25, %c0_26], %57 {strides = array<i32>} : memref<8x128xf32, #tpu.memory_space<vmem>>, vector<8x128xf32>,
    return
  }
  func.func @transform_0(%arg0: i32) -> (i32, i32) {
    %c0_i32 = arith.constant 0 : i32
    %c0_i32_0 = arith.constant 0 : i32
    return %arg0, %c0_i32 : i32, i32
  }
  func.func @transform_1(%arg0: i32) -> (i32, i32) {
    %c0_i32 = arith.constant 0 : i32
    %c0_i32_0 = arith.constant 0 : i32
    %c0_i32_1 = arith.constant 0 : i32
    return %c0_i32, %c0_i32_0 : i32, i32
  }
  func.func @transform_2(%arg0: i32) -> (i32, i32) {
    %c0_i32 = arith.constant 0 : i32
    %c0_i32_0 = arith.constant 0 : i32
    %c0_i32_1 = arith.constant 0 : i32
    return %c0_i32, %c0_i32_0 : i32, i32
  }
  func.func @transform_3(%arg0: i32) -> (i32, i32) {
    %c0_i32 = arith.constant 0 : i32
    %c0_i32_0 = arith.constant 0 : i32
    %c0_i32_1 = arith.constant 0 : i32
    return %c0_i32, %c0_i32_0 : i32, i32
  }
  func.func @transform_4(%arg0: i32) -> (i32, i32) {
    %c0_i32 = arith.constant 0 : i32
    %c0_i32_0 = arith.constant 0 : i32
    %c0_i32_1 = arith.constant 0 : i32
    return %c0_i32, %c0_i32_0 : i32, i32
  }
  func.func @transform_5(%arg0: i32) -> (i32, i32) {
    %c0_i32 = arith.constant 0 : i32
    %c0_i32_0 = arith.constant 0 : i32
    %c0_i32_1 = arith.constant 0 : i32
    return %c0_i32, %c0_i32_0 : i32, i32
  }
  func.func @transform_6(%arg0: i32) -> (i32, i32) {
    %c0_i32 = arith.constant 0 : i32
    %c0_i32_0 = arith.constant 0 : i32
    %c0_i32_1 = arith.constant 0 : i32
    return %c0_i32, %c0_i32_0 : i32, i32
  }
  func.func @transform_7(%arg0: i32) -> (i32, i32) {
    %c0_i32 = arith.constant 0 : i32
    %c0_i32_0 = arith.constant 0 : i32
    return %arg0, %c0_i32 : i32, i32
  }
}

</mosaic_0001>

<llo_original>
// kernel: tpu_custom_call.1
$region0: #{tpu_custom_call.1}
  #allocation0 [shape = 'u32[]', space=smem, size = 0x4, offset = 0x4, fixed_abs, tag = 'smem constant byte address 0x4 - core index']
  #allocation1 [shape = 'u32[144,128]{1,0:T(1,128)}', space=vmem, size = 0x12000, scoped, tag = 'internal scratch']
  %s0 = inlined_call_operand.hbm [shape: f32[32,128], index: 0, kind: input, shape index: {}]
  %s1 = inlined_call_operand.hbm [shape: bf16[128,256], index: 1, kind: input, shape index: {}]
  %s2 = inlined_call_operand.vmem [shape: f32[1,256], index: 2, kind: input, shape index: {}]
  %s3 = inlined_call_operand.hbm [shape: bf16[256,128], index: 3, kind: input, shape index: {}]
  %s4 = inlined_call_operand.vmem [shape: f32[1,128], index: 4, kind: input, shape index: {}]
  %s5 = inlined_call_operand.vmem [shape: f32[1,128], index: 5, kind: input, shape index: {}]
  %s6 = inlined_call_operand.vmem [shape: f32[1,128], index: 6, kind: input, shape index: {}]
  %s7 = inlined_call_operand.hbm [shape: f32[32,128], index: 7, kind: output, shape index: {}]
  %s8 = sld [smem:[#allocation0]]
  $region73: #{tpu_custom_call.1} parent=0
    _
  %s10 = ssub.s32 1, %s8
  %s11 = scalar_select 0, %s10, %s8
  $region1: #{tpu_custom_call.1} parent=0
    #allocation2 [shape = 'u8[8192]{0}', space=vmem, size = 0x2000, scoped, tag = 'input window, operand 0']
    #allocation3 [shape = 's32[2]{0}', space=sflag, size = 0x8, scoped, tag = 'scoped memory for tpu_custom_call.1']
    #allocation4 [shape = 's32[2]{0}', space=sflag, size = 0x8, scoped, tag = 'scoped memory for tpu_custom_call.1']
    #allocation5 [shape = 'u8[65536]{0}', space=vmem, size = 0x10000, scoped, tag = 'input window, operand 1, single buffered']
    #allocation6 [shape = 's32[1]{0}', space=sflag, size = 0x4, scoped, tag = 'scoped memory for tpu_custom_call.1']
    #allocation7 [shape = 'u8[65536]{0}', space=vmem, size = 0x10000, scoped, tag = 'input window, operand 3, single buffered']
    #allocation8 [shape = 'u8[8192]{0}', space=vmem, size = 0x2000, scoped, tag = 'output window, operand 0']
    %12 = vsyncpa [#allocation3], 0
    %s13 = scalar_lea.sflag [#allocation3], 1
    %14 = vsyncpa %s13, 0
    %15 = vsyncpa [#allocation6], 0
    %16 = vsyncpa [#allocation4], 0
    %s17 = scalar_lea.sflag [#allocation4], 1
    %18 = vsyncpa %s17, 0
    loop: start=0, step=1, limit=6
    $region2: #{tpu_custom_call.1} parent=1 // loop_pre_header
      _
    $region3: #{tpu_custom_call.1} parent=1 // loop_header
      %s20 = sphi 0, %s24
      %p21 = scmp.ge.s32.totalorder %s20, 6
      %s30 = sphi 0, %s32
      %s33 = sphi 0, %s30
      %s34 = sphi 0, %s33
      %s50 = sphi 0, %s34
      %s54 = sphi 0, %s54
      %s56 = sphi 0, %s54
      %s57 = sphi 0, %s56
      %s71 = sphi 0, %s57
      %s75 = sphi 0, %s75
      %s77 = sphi 0, %s75
      %s78 = sphi 0, %s77
      %s92 = sphi 0, %s78
      %s96 = sphi 0, %s96
      %s98 = sphi 0, %s96
      %s99 = sphi 0, %s98
      %s113 = sphi 0, %s99
      %s117 = sphi 0, %s117
      %s119 = sphi 0, %s117
      %s120 = sphi 0, %s119
      %s134 = sphi 0, %s120
      %s138 = sphi 0, %s138
      %s140 = sphi 0, %s138
      %s141 = sphi 0, %s140
      %s155 = sphi 0, %s141
      %s159 = sphi 0, %s159
      %s161 = sphi 0, %s159
      %s162 = sphi 0, %s161
      %s176 = sphi 0, %s162
      %s182 = sphi 0, %s184
      %s185 = sphi 0, %s182
      %s186 = sphi 0, %s185
      %s202 = sphi 0, %s186
    $region4: #{tpu_custom_call.1} parent=1 // loop_header_branch
      %23 = sbr.rel (%p21) target = $region8
    $region5: #{tpu_custom_call.1} parent=1 // loop_body
      %s25 = ssub.s32 %s20, 1
      %s26 = ssub.s32 %s20, 2
      %s27 = sadd.s32 %s20, 1
      %s28 = ssub.s32 %s20, %s27
      %p29 = scmp.eq.s32.totalorder %s28, 0
      %s31 = sadd.s32 %s30, 1
      %s32 = scalar_select %p29, %s30, %s31
      %p35 = pneg %p29
      %p36 = scmp.eq.s32.totalorder %s20, 3
      %p37 = por %p35, %p36
      %p38 = scmp.ne.s32.totalorder %s30, %s33
      %p39 = scmp.eq.s32.totalorder %s20, 0
      %p40 = por %p38, %p39
      %p41 = scmp.ne.s32.totalorder %s30, %s33
      %p42 = scmp.eq.s32.totalorder %s25, 3
      %p43 = por %p41, %p42
      %p44 = scmp.ne.s32.totalorder %s33, %s34
      %p45 = scmp.eq.s32.totalorder %s25, 0
      %p46 = por %p44, %p45
      %p47 = scmp.ne.s32.totalorder %s33, %s34
      %p48 = scmp.eq.s32.totalorder %s26, 3
      %p49 = por %p47, %p48
      %p51 = scmp.ne.s32.totalorder %s34, %s50
      %p52 = scmp.eq.s32.totalorder %s26, 0
      %p53 = por %p51, %p52
      %s55 = sadd.s32 %s54, 1
      %p58 = scmp.eq.s32.totalorder %s20, 3
      %p59 = scmp.ne.s32.totalorder %s54, %s56
      %p60 = scmp.eq.s32.totalorder %s20, 0
      %p61 = por %p59, %p60
      %p62 = scmp.ne.s32.totalorder %s54, %s56
      %p63 = scmp.eq.s32.totalorder %s25, 3
      %p64 = por %p62, %p63
      %p65 = scmp.ne.s32.totalorder %s56, %s57
      %p66 = scmp.eq.s32.totalorder %s25, 0
      %p67 = por %p65, %p66
      %p68 = scmp.ne.s32.totalorder %s56, %s57
      %p69 = scmp.eq.s32.totalorder %s26, 3
      %p70 = por %p68, %p69
      %p72 = scmp.ne.s32.totalorder %s57, %s71
      %p73 = scmp.eq.s32.totalorder %s26, 0
      %p74 = por %p72, %p73
      %s76 = sadd.s32 %s75, 1
      %p79 = scmp.eq.s32.totalorder %s20, 3
      %p80 = scmp.ne.s32.totalorder %s75, %s77
      %p81 = scmp.eq.s32.totalorder %s20, 0
      %p82 = por %p80, %p81
      %p83 = scmp.ne.s32.totalorder %s75, %s77
      %p84 = scmp.eq.s32.totalorder %s25, 3
      %p85 = por %p83, %p84
      %p86 = scmp.ne.s32.totalorder %s77, %s78
      %p87 = scmp.eq.s32.totalorder %s25, 0
      %p88 = por %p86, %p87
      %p89 = scmp.ne.s32.totalorder %s77, %s78
      %p90 = scmp.eq.s32.totalorder %s26, 3
      %p91 = por %p89, %p90
      %p93 = scmp.ne.s32.totalorder %s78, %s92
      %p94 = scmp.eq.s32.totalorder %s26, 0
      %p95 = por %p93, %p94
      %s97 = sadd.s32 %s96, 1
      %p100 = scmp.eq.s32.totalorder %s20, 3
      %p101 = scmp.ne.s32.totalorder %s96, %s98
      %p102 = scmp.eq.s32.totalorder %s20, 0
      %p103 = por %p101, %p102
      %p104 = scmp.ne.s32.totalorder %s96, %s98
      %p105 = scmp.eq.s32.totalorder %s25, 3
      %p106 = por %p104, %p105
      %p107 = scmp.ne.s32.totalorder %s98, %s99
      %p108 = scmp.eq.s32.totalorder %s25, 0
      %p109 = por %p107, %p108
      %p110 = scmp.ne.s32.totalorder %s98, %s99
      %p111 = scmp.eq.s32.totalorder %s26, 3
      %p112 = por %p110, %p111
      %p114 = scmp.ne.s32.totalorder %s99, %s113
      %p115 = scmp.eq.s32.totalorder %s26, 0
      %p116 = por %p114, %p115
      %s118 = sadd.s32 %s117, 1
      %p121 = scmp.eq.s32.totalorder %s20, 3
      %p122 = scmp.ne.s32.totalorder %s117, %s119
      %p123 = scmp.eq.s32.totalorder %s20, 0
      %p124 = por %p122, %p123
      %p125 = scmp.ne.s32.totalorder %s117, %s119
      %p126 = scmp.eq.s32.totalorder %s25, 3
      %p127 = por %p125, %p126
      %p128 = scmp.ne.s32.totalorder %s119, %s120
      %p129 = scmp.eq.s32.totalorder %s25, 0
      %p130 = por %p128, %p129
      %p131 = scmp.ne.s32.totalorder %s119, %s120
      %p132 = scmp.eq.s32.totalorder %s26, 3
      %p133 = por %p131, %p132
      %p135 = scmp.ne.s32.totalorder %s120, %s134
      %p136 = scmp.eq.s32.totalorder %s26, 0
      %p137 = por %p135, %p136
      %s139 = sadd.s32 %s138, 1
      %p142 = scmp.eq.s32.totalorder %s20, 3
      %p143 = scmp.ne.s32.totalorder %s138, %s140
      %p144 = scmp.eq.s32.totalorder %s20, 0
      %p145 = por %p143, %p144
      %p146 = scmp.ne.s32.totalorder %s138, %s140
      %p147 = scmp.eq.s32.totalorder %s25, 3
      %p148 = por %p146, %p147
      %p149 = scmp.ne.s32.totalorder %s140, %s141
      %p150 = scmp.eq.s32.totalorder %s25, 0
      %p151 = por %p149, %p150
      %p152 = scmp.ne.s32.totalorder %s140, %s141
      %p153 = scmp.eq.s32.totalorder %s26, 3
      %p154 = por %p152, %p153
      %p156 = scmp.ne.s32.totalorder %s141, %s155
      %p157 = scmp.eq.s32.totalorder %s26, 0
      %p158 = por %p156, %p157
      %s160 = sadd.s32 %s159, 1
      %p163 = scmp.eq.s32.totalorder %s20, 3
      %p164 = scmp.ne.s32.totalorder %s159, %s161
      %p165 = scmp.eq.s32.totalorder %s20, 0
      %p166 = por %p164, %p165
      %p167 = scmp.ne.s32.totalorder %s159, %s161
      %p168 = scmp.eq.s32.totalorder %s25, 3
      %p169 = por %p167, %p168
      %p170 = scmp.ne.s32.totalorder %s161, %s162
      %p171 = scmp.eq.s32.totalorder %s25, 0
      %p172 = por %p170, %p171
      %p173 = scmp.ne.s32.totalorder %s161, %s162
      %p174 = scmp.eq.s32.totalorder %s26, 3
      %p175 = por %p173, %p174
      %p177 = scmp.ne.s32.totalorder %s162, %s176
      %p178 = scmp.eq.s32.totalorder %s26, 0
      %p179 = por %p177, %p178
      %s180 = ssub.s32 %s20, %s27
      %p181 = scmp.eq.s32.totalorder %s180, 0
      %s183 = sadd.s32 %s182, 1
      %s184 = scalar_select %p181, %s182, %s183
      %p187 = pneg %p181
      %p188 = scmp.eq.s32.totalorder %s20, 3
      %p189 = por %p187, %p188
      %p190 = scmp.ne.s32.totalorder %s182, %s185
      %p191 = scmp.eq.s32.totalorder %s20, 0
      %p192 = por %p190, %p191
      %p193 = scmp.ne.s32.totalorder %s182, %s185
      %p194 = scmp.eq.s32.totalorder %s25, 3
      %p195 = por %p193, %p194
      %p196 = scmp.ne.s32.totalorder %s185, %s186
      %p197 = scmp.eq.s32.totalorder %s25, 0
      %p198 = por %p196, %p197
      %p199 = scmp.ne.s32.totalorder %s185, %s186
      %p200 = scmp.eq.s32.totalorder %s26, 3
      %p201 = por %p199, %p200
      %p203 = scmp.ne.s32.totalorder %s186, %s202
      %p204 = scmp.eq.s32.totalorder %s26, 0
      %p205 = por %p203, %p204
      %p206 = scmp.le.s32.totalorder 1, %s20
      %p207 = scmp.lt.s32.totalorder %s20, 5
      %p208 = pnand %p206, %p207
      %p209 = pneg %p208
      // Predicated region
      $region9: #{tpu_custom_call.1} parent=5 // pred_check
        _
      $region10: #{tpu_custom_call.1} parent=5 // pred_check_branch
        %211 = sbr.rel (%p208) target = $region12
      $region11: #{tpu_custom_call.1} parent=5 // pred_region
        %s212 = ssub.s32 %s20, 1
        // Predicated region
        $region13: #{tpu_custom_call.1} parent=11 // pred_check
          %p213 = pneg %p67
        $region14: #{tpu_custom_call.1} parent=11 // pred_check_branch
          %215 = sbr.rel (%p213) target = $region16
        $region15: #{tpu_custom_call.1} parent=11 // pred_region
          %s217 = ssub.s32 2048, 2048
          %218 = vsyncadd [#allocation6], %s217
          %s219 = sshll.u32 [#allocation5], 4
          %s220 = int_to_ptr.vmem [resolvable:$true] %s219
          %225 = dma.hbm_to_vmem [thread:$0]  %s1, 2048, %s220, [#allocation6], 128, 128, 8
        $region16: #{tpu_custom_call.1} parent=11 // pred_fallthru
          _
        // Predicated region
        $region17: #{tpu_custom_call.1} parent=11 // pred_check
          %p226 = pneg %p88
        $region18: #{tpu_custom_call.1} parent=11 // pred_check_branch
          %228 = sbr.rel (%p226) target = $region20
        $region19: #{tpu_custom_call.1} parent=11 // pred_region
          _
        $region20: #{tpu_custom_call.1} parent=11 // pred_fallthru
          _
        // Predicated region
        $region21: #{tpu_custom_call.1} parent=11 // pred_check
          %p229 = pneg %p109
        $region22: #{tpu_custom_call.1} parent=11 // pred_check_branch
          %231 = sbr.rel (%p229) target = $region24
        $region23: #{tpu_custom_call.1} parent=11 // pred_region
          %s233 = ssub.s32 2048, 2048
          %234 = vsyncadd [#allocation6], %s233
          %s235 = sshll.u32 [#allocation7], 4
          %s236 = int_to_ptr.vmem [resolvable:$true] %s235
          %241 = dma.hbm_to_vmem [thread:$0]  %s3, 2048, %s236, [#allocation6], 64, 64, 4
        $region24: #{tpu_custom_call.1} parent=11 // pred_fallthru
          _
        // Predicated region
        $region25: #{tpu_custom_call.1} parent=11 // pred_check
          %p242 = pneg %p130
        $region26: #{tpu_custom_call.1} parent=11 // pred_check_branch
          %244 = sbr.rel (%p242) target = $region28
        $region27: #{tpu_custom_call.1} parent=11 // pred_region
          _
        $region28: #{tpu_custom_call.1} parent=11 // pred_fallthru
          _
        // Predicated region
        $region29: #{tpu_custom_call.1} parent=11 // pred_check
          %p245 = pneg %p151
        $region30: #{tpu_custom_call.1} parent=11 // pred_check_branch
          %247 = sbr.rel (%p245) target = $region32
        $region31: #{tpu_custom_call.1} parent=11 // pred_region
          _
        $region32: #{tpu_custom_call.1} parent=11 // pred_fallthru
          _
        // Predicated region
        $region33: #{tpu_custom_call.1} parent=11 // pred_check
          %p248 = pneg %p172
        $region34: #{tpu_custom_call.1} parent=11 // pred_check_branch
          %250 = sbr.rel (%p248) target = $region36
        $region35: #{tpu_custom_call.1} parent=11 // pred_region
          _
        $region36: #{tpu_custom_call.1} parent=11 // pred_fallthru
          _
      $region12: #{tpu_custom_call.1} parent=5 // pred_fallthru
        _
      %p251 = scmp.lt.s32.totalorder %s20, 4
      // Predicated region
      $region37: #{tpu_custom_call.1} parent=5 // pred_check
        %p252 = pneg %p251
      $region38: #{tpu_custom_call.1} parent=5 // pred_check_branch
        %254 = sbr.rel (%p252) target = $region40
      $region39: #{tpu_custom_call.1} parent=5 // pred_region
        // Predicated region
        $region41: #{tpu_custom_call.1} parent=39 // pred_check
          %p255 = pneg %p40
        $region42: #{tpu_custom_call.1} parent=39 // pred_check_branch
          %257 = sbr.rel (%p255) target = $region44
        $region43: #{tpu_custom_call.1} parent=39 // pred_region
          %s258 = sand.u32 %s30, 1
          %s259 = scalar_lea.sflag [#allocation3], %s258
          %s260 = sand.u32 %s30, 1
          %s261 = smul.addr %s260, 8
          %s262 = scalar_lea.vmem [#allocation2], %s261
          %s264 = ssub.s32 128, 128
          %265 = vsyncadd %s259, %s264
          %s266 = smul.addr %s20, 128
          %s267 = scalar_lea.hbm %s0, %s266
          %s269 = sshll.u32 %s262, 4
          %s270 = int_to_ptr.vmem [resolvable:$true] %s269
          %272 = dma.hbm_to_vmem [thread:$0]  %s267, 128, %s270, %s259
        $region44: #{tpu_custom_call.1} parent=39 // pred_fallthru
          _
      $region40: #{tpu_custom_call.1} parent=5 // pred_fallthru
        _
      %p273 = scmp.le.s32.totalorder 1, %s20
      %p274 = scmp.lt.s32.totalorder %s20, 5
      %p275 = pnand %p273, %p274
      %p276 = pneg %p275
      // Predicated region
      $region45: #{tpu_custom_call.1} parent=5 // pred_check
        _
      $region46: #{tpu_custom_call.1} parent=5 // pred_check_branch
        %278 = sbr.rel (%p275) target = $region48
      $region47: #{tpu_custom_call.1} parent=5 // pred_region
        %s279 = ssub.s32 %s20, 1
        %s280 = sand.u32 %s33, 1
        %s281 = scalar_lea.sflag [#allocation3], %s280
        %s282 = sand.u32 %s33, 1
        %s283 = smul.addr %s282, 8
        %s284 = scalar_lea.vmem [#allocation2], %s283
        // Predicated region
        $region49: #{tpu_custom_call.1} parent=47 // pred_check
          %p285 = pneg %p46
        $region50: #{tpu_custom_call.1} parent=47 // pred_check_branch
          %287 = sbr.rel (%p285) target = $region52
        $region51: #{tpu_custom_call.1} parent=47 // pred_region
          %288 = dma.done %s281, 128
        $region52: #{tpu_custom_call.1} parent=47 // pred_fallthru
          _
        // Predicated region
        $region53: #{tpu_custom_call.1} parent=47 // pred_check
          %p289 = pneg %p67
        $region54: #{tpu_custom_call.1} parent=47 // pred_check_branch
          %291 = sbr.rel (%p289) target = $region56
        $region55: #{tpu_custom_call.1} parent=47 // pred_region
          %292 = dma.done [#allocation6], 2048
        $region56: #{tpu_custom_call.1} parent=47 // pred_fallthru
          _
        // Predicated region
        $region57: #{tpu_custom_call.1} parent=47 // pred_check
          %p293 = pneg %p109
        $region58: #{tpu_custom_call.1} parent=47 // pred_check_branch
          %295 = sbr.rel (%p293) target = $region60
        $region59: #{tpu_custom_call.1} parent=47 // pred_region
          %296 = dma.done [#allocation6], 2048
        $region60: #{tpu_custom_call.1} parent=47 // pred_fallthru
          _
        %s297 = sand.u32 %s33, 1
        %s298 = scalar_lea.sflag [#allocation3], %s297
        %s299 = sand.u32 %s33, 1
        %s300 = smul.addr %s299, 8
        %s301 = scalar_lea.vmem [#allocation2], %s300
        %p302 = pneg %p46
        %p303 = pneg %p43
        %p304 = pneg %p67
        %p305 = pneg %p64
        %p306 = pneg %p88
        %p307 = pneg %p85
        %p308 = pneg %p109
        %p309 = pneg %p106
        %p310 = pneg %p130
        %p311 = pneg %p127
        %p312 = pneg %p151
        %p313 = pneg %p148
        %p314 = pneg %p172
        %p315 = pneg %p169
        %p316 = pneg %p198
        %p317 = pneg %p195
        %s318 = sand.u32 %s185, 1
        %s319 = scalar_lea.sflag [#allocation4], %s318
        %s320 = sand.u32 %s185, 1
        %s321 = smul.addr %s320, 8
        %s322 = scalar_lea.vmem [#allocation8], %s321
        %v324 = vld [vmem:[%s284] sm:$0xff]
        %v325 = vpack.c.bf16 %v324, %v324
        %v326 = vld [vmem:[#allocation5] sm:$0xff]
        %v327 = vld [vmem:[#allocation5 + $0x8] sm:$0xff]
        %v328 = vld [vmem:[#allocation5 + $0x10] sm:$0xff]
        %v329 = vld [vmem:[#allocation5 + $0x18] sm:$0xff]
        %v330 = vld [vmem:[#allocation5 + $0x20] sm:$0xff]
        %v331 = vld [vmem:[#allocation5 + $0x28] sm:$0xff]
        %v332 = vld [vmem:[#allocation5 + $0x30] sm:$0xff]
        %v333 = vld [vmem:[#allocation5 + $0x38] sm:$0xff]
        %v334 = vld [vmem:[#allocation5 + $0x40] sm:$0xff]
        %v335 = vld [vmem:[#allocation5 + $0x48] sm:$0xff]
        %v336 = vld [vmem:[#allocation5 + $0x50] sm:$0xff]
        %v337 = vld [vmem:[#allocation5 + $0x58] sm:$0xff]
        %v338 = vld [vmem:[#allocation5 + $0x60] sm:$0xff]
        %v339 = vld [vmem:[#allocation5 + $0x68] sm:$0xff]
        %v340 = vld [vmem:[#allocation5 + $0x70] sm:$0xff]
        %v341 = vld [vmem:[#allocation5 + $0x78] sm:$0xff]
        %v342 = vld [vmem:[%s2] sm:$0x3]
        %v344 = vlaneseq
        %v345 = vshrl.u32 %v344, 7
        %v346 = vsub.s32 0, %v345
        %v347 = vrot.slane %v342, %v346
        %v348 = vlaneseq
        %v349 = vshrl.u32 %v348, 7
        %v350 = vsub.s32 1, %v349
        %v351 = vrot.slane %v342, %v350
        %v370 = vunpack.c.l.b16 %v326
        %v371 = vunpack.c.h.b16 %v326
        %v372 = vunpack.c.l.b16 %v327
        %v373 = vunpack.c.h.b16 %v327
        %v374 = vunpack.c.l.b16 %v328
        %v375 = vunpack.c.h.b16 %v328
        %v376 = vunpack.c.l.b16 %v329
        %v377 = vunpack.c.h.b16 %v329
        %v378 = vunpack.c.l.b16 %v330
        %v379 = vunpack.c.h.b16 %v330
        %v380 = vunpack.c.l.b16 %v331
        %v381 = vunpack.c.h.b16 %v331
        %v382 = vunpack.c.l.b16 %v332
        %v383 = vunpack.c.h.b16 %v332
        %v384 = vunpack.c.l.b16 %v333
        %v385 = vunpack.c.h.b16 %v333
        %v386 = vunpack.c.l.b16 %v334
        %v387 = vunpack.c.h.b16 %v334
        %v388 = vunpack.c.l.b16 %v335
        %v389 = vunpack.c.h.b16 %v335
        %v390 = vunpack.c.l.b16 %v336
        %v391 = vunpack.c.h.b16 %v336
        %v392 = vunpack.c.l.b16 %v337
        %v393 = vunpack.c.h.b16 %v337
        %v394 = vunpack.c.l.b16 %v338
        %v395 = vunpack.c.h.b16 %v338
        %v396 = vunpack.c.l.b16 %v339
        %v397 = vunpack.c.h.b16 %v339
        %v398 = vunpack.c.l.b16 %v340
        %v399 = vunpack.c.h.b16 %v340
        %v400 = vunpack.c.l.b16 %v341
        %v401 = vunpack.c.h.b16 %v341
        %v402 = vpack.c.b16 %v372, %v370
        %v403 = vpack.c.b16 %v373, %v371
        %v404 = vpack.c.b16 %v376, %v374
        %v405 = vpack.c.b16 %v377, %v375
        %v406 = vpack.c.b16 %v380, %v378
        %v407 = vpack.c.b16 %v381, %v379
        %v408 = vpack.c.b16 %v384, %v382
        %v409 = vpack.c.b16 %v385, %v383
        %v410 = vpack.c.b16 %v388, %v386
        %v411 = vpack.c.b16 %v389, %v387
        %v412 = vpack.c.b16 %v392, %v390
        %v413 = vpack.c.b16 %v393, %v391
        %v414 = vpack.c.b16 %v396, %v394
        %v415 = vpack.c.b16 %v397, %v395
        %v416 = vpack.c.b16 %v400, %v398
        %v417 = vpack.c.b16 %v401, %v399
        %434 = vmatprep.subr.bf16.mxu0 %v403
        %435 = vmatpush1.bf16.msra.mxu0 %v402
        %436 = vmatprep.subr.bf16.mxu0 %v405
        %437 = vmatpush1.bf16.msra.mxu0 %v404
        %438 = vmatprep.subr.bf16.mxu0 %v407
        %439 = vmatpush1.bf16.msra.mxu0 %v406
        %440 = vmatprep.subr.bf16.mxu0 %v409
        %441 = vmatpush1.bf16.msra.mxu0 %v408
        %442 = vmatprep.subr.bf16.mxu0 %v411
        %443 = vmatpush1.bf16.msra.mxu0 %v410
        %444 = vmatprep.subr.bf16.mxu0 %v413
        %445 = vmatpush1.bf16.msra.mxu0 %v412
        %446 = vmatprep.subr.bf16.mxu0 %v415
        %447 = vmatpush1.bf16.msra.mxu0 %v414
        %448 = vmatprep.subr.bf16.mxu0 %v417
        %449 = vmatpush1.bf16.msra.mxu0 %v416
        %450 = vmatprep.subr.bf16.mxu0 0
        %451 = vmatpush1.bf16.msra.mxu0 0
        %452 = vmatprep.subr.bf16.mxu0 0
        %453 = vmatpush1.bf16.msra.mxu0 0
        %454 = vmatprep.subr.bf16.mxu0 0
        %455 = vmatpush1.bf16.msra.mxu0 0
        %456 = vmatprep.subr.bf16.mxu0 0
        %457 = vmatpush1.bf16.msra.mxu0 0
        %458 = vmatprep.subr.bf16.mxu0 0
        %459 = vmatpush1.bf16.msra.mxu0 0
        %460 = vmatprep.subr.bf16.mxu0 0
        %461 = vmatpush1.bf16.msra.mxu0 0
        %462 = vmatprep.subr.bf16.mxu0 0
        %463 = vmatpush1.bf16.msra.mxu0 0
        %464 = vmatprep.subr.bf16.mxu0 0
        %465 = vmatpush1.bf16.msra.mxu0 0
        %466 = vmatprep.mubr.bf16.mxu0 0
        %467 = vmatmul.mubr.bf16.gmra.mrb[0].mxu0 %v325
        %v468 = vpop.f32.mrb[0].mxu0
        %v469 = vadd.f32 %v347, %v468
        %v470 = vpop.f32.mrb[0].mxu0
        %v471 = vadd.f32 %v351, %v470
        %v472 = vpop.f32.mrb[0].mxu0
        %v473 = vpop.f32.mrb[0].mxu0
        %474 = vdwg.mxu0
        %v475 = vmax.f32 %v469, 0.0
        %v476 = vmax.f32 %v471, 0.0
        %v477 = vadd.f32 %v475, %v476
        %478 = vadd.xlane.f32.xlu0 %v477
        %v479 = vpop.xlane.xlu0 %478
        %v480 = vmul.f32 %v475, %v475
        %v481 = vmul.f32 %v476, %v476
        %v482 = vadd.f32 %v480, %v481
        %483 = vadd.xlane.f32.xlu0 %v482
        %v484 = vpop.xlane.xlu0 %483
        %v485 = vmul.f32 %v479, 0.00390625
        %v486 = vmul.f32 %v484, 0.00390625
        %v487 = vmul.f32 %v485, %v485
        %v488 = vsub.f32 %v486, %v487
        %v489 = vsub.f32 %v475, %v485
        %v490 = vsub.f32 %v476, %v485
        %v491 = vadd.f32 %v488, 1e-05
        %v492 = vrsqrt.pop %v491
        %v493 = vmul.f32 %v489, %v492
        %v494 = vmul.f32 %v490, %v492
        %v495 = vpack.c.bf16 %v493, %v493
        %v496 = vpack.c.bf16 %v494, %v494
        %v497 = vld [vmem:[#allocation7] sm:$0xf]
        %v498 = vld [vmem:[#allocation7 + $0x4] sm:$0xf]
        %v499 = vld [vmem:[#allocation7 + $0x8] sm:$0xf]
        %v500 = vld [vmem:[#allocation7 + $0xc] sm:$0xf]
        %v501 = vld [vmem:[#allocation7 + $0x10] sm:$0xf]
        %v502 = vld [vmem:[#allocation7 + $0x14] sm:$0xf]
        %v503 = vld [vmem:[#allocation7 + $0x18] sm:$0xf]
        %v504 = vld [vmem:[#allocation7 + $0x1c] sm:$0xf]
        %v505 = vld [vmem:[#allocation7 + $0x20] sm:$0xf]
        %v506 = vld [vmem:[#allocation7 + $0x24] sm:$0xf]
        %v507 = vld [vmem:[#allocation7 + $0x28] sm:$0xf]
        %v508 = vld [vmem:[#allocation7 + $0x2c] sm:$0xf]
        %v509 = vld [vmem:[#allocation7 + $0x30] sm:$0xf]
        %v510 = vld [vmem:[#allocation7 + $0x34] sm:$0xf]
        %v511 = vld [vmem:[#allocation7 + $0x38] sm:$0xf]
        %v512 = vld [vmem:[#allocation7 + $0x3c] sm:$0xf]
        %v513 = vld [vmem:[#allocation7 + $0x40] sm:$0xf]
        %v514 = vld [vmem:[#allocation7 + $0x44] sm:$0xf]
        %v515 = vld [vmem:[#allocation7 + $0x48] sm:$0xf]
        %v516 = vld [vmem:[#allocation7 + $0x4c] sm:$0xf]
        %v517 = vld [vmem:[#allocation7 + $0x50] sm:$0xf]
        %v518 = vld [vmem:[#allocation7 + $0x54] sm:$0xf]
        %v519 = vld [vmem:[#allocation7 + $0x58] sm:$0xf]
        %v520 = vld [vmem:[#allocation7 + $0x5c] sm:$0xf]
        %v521 = vld [vmem:[#allocation7 + $0x60] sm:$0xf]
        %v522 = vld [vmem:[#allocation7 + $0x64] sm:$0xf]
        %v523 = vld [vmem:[#allocation7 + $0x68] sm:$0xf]
        %v524 = vld [vmem:[#allocation7 + $0x6c] sm:$0xf]
        %v525 = vld [vmem:[#allocation7 + $0x70] sm:$0xf]
        %v526 = vld [vmem:[#allocation7 + $0x74] sm:$0xf]
        %v527 = vld [vmem:[#allocation7 + $0x78] sm:$0xf]
        %v528 = vld [vmem:[#allocation7 + $0x7c] sm:$0xf]
        %v529 = vld [vmem:[%s4] sm:$0x1]
        %v531 = vlaneseq
        %v532 = vshrl.u32 %v531, 7
        %v533 = vsub.s32 0, %v532
        %v534 = vrot.slane %v529, %v533
        %v568 = vunpack.c.l.b16 %v497
        %v569 = vunpack.c.l.b16 %v498
        %v570 = vunpack.c.l.b16 %v499
        %v571 = vunpack.c.l.b16 %v500
        %v572 = vunpack.c.l.b16 %v501
        %v573 = vunpack.c.l.b16 %v502
        %v574 = vunpack.c.l.b16 %v503
        %v575 = vunpack.c.l.b16 %v504
        %v576 = vunpack.c.l.b16 %v505
        %v577 = vunpack.c.l.b16 %v506
        %v578 = vunpack.c.l.b16 %v507
        %v579 = vunpack.c.l.b16 %v508
        %v580 = vunpack.c.l.b16 %v509
        %v581 = vunpack.c.l.b16 %v510
        %v582 = vunpack.c.l.b16 %v511
        %v583 = vunpack.c.l.b16 %v512
        %v584 = vunpack.c.l.b16 %v513
        %v585 = vunpack.c.l.b16 %v514
        %v586 = vunpack.c.l.b16 %v515
        %v587 = vunpack.c.l.b16 %v516
        %v588 = vunpack.c.l.b16 %v517
        %v589 = vunpack.c.l.b16 %v518
        %v590 = vunpack.c.l.b16 %v519
        %v591 = vunpack.c.l.b16 %v520
        %v592 = vunpack.c.l.b16 %v521
        %v593 = vunpack.c.l.b16 %v522
        %v594 = vunpack.c.l.b16 %v523
        %v595 = vunpack.c.l.b16 %v524
        %v596 = vunpack.c.l.b16 %v525
        %v597 = vunpack.c.l.b16 %v526
        %v598 = vunpack.c.l.b16 %v527
        %v599 = vunpack.c.l.b16 %v528
        %v600 = vpack.c.b16 %v569, %v568
        %v601 = vpack.c.b16 %v571, %v570
        %v602 = vpack.c.b16 %v573, %v572
        %v603 = vpack.c.b16 %v575, %v574
        %v604 = vpack.c.b16 %v577, %v576
        %v605 = vpack.c.b16 %v579, %v578
        %v606 = vpack.c.b16 %v581, %v580
        %v607 = vpack.c.b16 %v583, %v582
        %v608 = vpack.c.b16 %v585, %v584
        %v609 = vpack.c.b16 %v587, %v586
        %v610 = vpack.c.b16 %v589, %v588
        %v611 = vpack.c.b16 %v591, %v590
        %v612 = vpack.c.b16 %v593, %v592
        %v613 = vpack.c.b16 %v595, %v594
        %v614 = vpack.c.b16 %v597, %v596
        %v615 = vpack.c.b16 %v599, %v598
        %632 = vmatprep.subr.bf16.mxu0 0
        %633 = vmatpush1.bf16.msra.mxu0 %v600
        %634 = vmatprep.subr.bf16.mxu0 0
        %635 = vmatpush1.bf16.msra.mxu0 %v601
        %636 = vmatprep.subr.bf16.mxu0 0
        %637 = vmatpush1.bf16.msra.mxu0 %v602
        %638 = vmatprep.subr.bf16.mxu0 0
        %639 = vmatpush1.bf16.msra.mxu0 %v603
        %640 = vmatprep.subr.bf16.mxu0 0
        %641 = vmatpush1.bf16.msra.mxu0 %v604
        %642 = vmatprep.subr.bf16.mxu0 0
        %643 = vmatpush1.bf16.msra.mxu0 %v605
        %644 = vmatprep.subr.bf16.mxu0 0
        %645 = vmatpush1.bf16.msra.mxu0 %v606
        %646 = vmatprep.subr.bf16.mxu0 0
        %647 = vmatpush1.bf16.msra.mxu0 %v607
        %648 = vmatprep.subr.bf16.mxu0 0
        %649 = vmatpush1.bf16.msra.mxu0 %v608
        %650 = vmatprep.subr.bf16.mxu0 0
        %651 = vmatpush1.bf16.msra.mxu0 %v609
        %652 = vmatprep.subr.bf16.mxu0 0
        %653 = vmatpush1.bf16.msra.mxu0 %v610
        %654 = vmatprep.subr.bf16.mxu0 0
        %655 = vmatpush1.bf16.msra.mxu0 %v611
        %656 = vmatprep.subr.bf16.mxu0 0
        %657 = vmatpush1.bf16.msra.mxu0 %v612
        %658 = vmatprep.subr.bf16.mxu0 0
        %659 = vmatpush1.bf16.msra.mxu0 %v613
        %660 = vmatprep.subr.bf16.mxu0 0
        %661 = vmatpush1.bf16.msra.mxu0 %v614
        %662 = vmatprep.subr.bf16.mxu0 0
        %663 = vmatpush1.bf16.msra.mxu0 %v615
        %664 = vmatprep.mubr.bf16.mxu0 %v496
        %665 = vmatmul.mubr.bf16.gmra.mrb[0].mxu0 %v495
        %v666 = vpop.f32.mrb[0].mxu0
        %v667 = vadd.f32 %v534, %v666
        %v668 = vpop.f32.mrb[0].mxu0
        %v669 = vpop.f32.mrb[0].mxu0
        %v670 = vpop.f32.mrb[0].mxu0
        %671 = vdwg.mxu0
        %672 = vadd.xlane.f32.xlu0 %v667
        %v673 = vpop.xlane.xlu0 %672
        %v674 = vmul.f32 %v667, %v667
        %675 = vadd.xlane.f32.xlu0 %v674
        %v676 = vpop.xlane.xlu0 %675
        %v677 = vmul.f32 %v673, 0.0078125
        %v678 = vmul.f32 %v676, 0.0078125
        %v679 = vmul.f32 %v677, %v677
        %v680 = vsub.f32 %v678, %v679
        %v681 = vsub.f32 %v667, %v677
        %v682 = vadd.f32 %v680, 1e-05
        %v683 = vrsqrt.pop %v682
        %v684 = vmul.f32 %v681, %v683
        %v685 = vld [vmem:[%s5] sm:$0x1]
        %v687 = vlaneseq
        %v688 = vshrl.u32 %v687, 7
        %v689 = vsub.s32 0, %v688
        %v690 = vrot.slane %v685, %v689
        %v692 = vmul.f32 %v684, %v690
        %v693 = vld [vmem:[%s6] sm:$0x1]
        %v695 = vlaneseq
        %v696 = vshrl.u32 %v695, 7
        %v697 = vsub.s32 0, %v696
        %v698 = vrot.slane %v693, %v697
        %v700 = vadd.f32 %v692, %v698
        %v701 = vadd.f32 %v324, %v700
        %702 = vst [vmem:[%s322] sm:$0xff] %v701
        %s703 = sand.u32 %s185, 1
        %s704 = scalar_lea.sflag [#allocation4], %s703
        %s705 = sand.u32 %s185, 1
        %s706 = smul.addr %s705, 8
        %s707 = scalar_lea.vmem [#allocation8], %s706
        // Predicated region
        $region61: #{tpu_custom_call.1} parent=47 // pred_check
          %p708 = pneg %p195
        $region62: #{tpu_custom_call.1} parent=47 // pred_check_branch
          %710 = sbr.rel (%p708) target = $region64
        $region63: #{tpu_custom_call.1} parent=47 // pred_region
          %s712 = ssub.s32 128, 128
          %713 = vsyncadd %s704, %s712
          %s714 = smul.addr %s25, 128
          %s715 = scalar_lea.hbm %s7, %s714
          %s717 = sshll.u32 %s707, 4
          %s718 = int_to_ptr.vmem [resolvable:$true] %s717
          %720 = dma.vmem_to_hbm [thread:$0]  %s718, 128, %s715, %s704
        $region64: #{tpu_custom_call.1} parent=47 // pred_fallthru
          _
      $region48: #{tpu_custom_call.1} parent=5 // pred_fallthru
        _
      %p721 = scmp.le.s32.totalorder 2, %s20
      // Predicated region
      $region65: #{tpu_custom_call.1} parent=5 // pred_check
        %p722 = pneg %p721
      $region66: #{tpu_custom_call.1} parent=5 // pred_check_branch
        %724 = sbr.rel (%p722) target = $region68
      $region67: #{tpu_custom_call.1} parent=5 // pred_region
        %s725 = ssub.s32 %s20, 2
        // Predicated region
        $region69: #{tpu_custom_call.1} parent=67 // pred_check
          %p726 = pneg %p201
        $region70: #{tpu_custom_call.1} parent=67 // pred_check_branch
          %728 = sbr.rel (%p726) target = $region72
        $region71: #{tpu_custom_call.1} parent=67 // pred_region
          %s729 = sand.u32 %s186, 1
          %s730 = scalar_lea.sflag [#allocation4], %s729
          %s731 = sand.u32 %s186, 1
          %s732 = smul.addr %s731, 8
          %s733 = scalar_lea.vmem [#allocation8], %s732
          %734 = dma.done %s730, 128
        $region72: #{tpu_custom_call.1} parent=67 // pred_fallthru
          _
      $region68: #{tpu_custom_call.1} parent=5 // pred_fallthru
        _
    $region6: #{tpu_custom_call.1} parent=1 // loop_footer
      %s24 = sadd.s32 1, %s20
    $region7: #{tpu_custom_call.1} parent=1 // loop_footer_branch
      %19 = sbr.rel target = $region3
    $region8: #{tpu_custom_call.1} parent=1 // loop_exit
      _
    %735 = vsyncpa [#allocation3], 1
    %s736 = scalar_lea.sflag [#allocation3], 1
    %737 = vsyncpa %s736, 1
    %738 = vsyncpa [#allocation6], 1
    %739 = vsyncpa [#allocation4], 1
    %s740 = scalar_lea.sflag [#allocation4], 1
    %741 = vsyncpa %s740, 1

// kernel: tpu_custom_call.1
$region0: #{tpu_custom_call.1}
  #allocation0 [shape = 'u32[]', space=smem, size = 0x4, offset = 0x4, fixed_abs, tag = 'smem constant byte address 0x4 - core index']
  #allocation1 [shape = 'u32[144,128]{1,0:T(1,128)}', space=vmem, size = 0x12000, scoped, tag = 'internal scratch']
  %s0 = inlined_call_operand.hbm [shape: f32[32,128], index: 0, kind: input, shape index: {}]
  %s1 = inlined_call_operand.hbm [shape: bf16[128,256], index: 1, kind: input, shape index: {}]
  %s2 = inlined_call_operand.vmem [shape: f32[1,256], index: 2, kind: input, shape index: {}]
  %s3 = inlined_call_operand.hbm [shape: bf16[256,128], index: 3, kind: input, shape index: {}]
  %s4 = inlined_call_operand.vmem [shape: f32[1,128], index: 4, kind: input, shape index: {}]
  %s5 = inlined_call_operand.vmem [shape: f32[1,128], index: 5, kind: input, shape index: {}]
  %s6 = inlined_call_operand.vmem [shape: f32[1,128], index: 6, kind: input, shape index: {}]
  %s7 = inlined_call_operand.hbm [shape: f32[32,128], index: 7, kind: output, shape index: {}]
  %s8 = sld [smem:[#allocation0]]
  $region73: #{tpu_custom_call.1} parent=0
    _
  %s10 = ssub.s32 1, %s8
  %s11 = scalar_select 0, %s10, %s8
  $region1: #{tpu_custom_call.1} parent=0
    #allocation2 [shape = 'u8[8192]{0}', space=vmem, size = 0x2000, scoped, tag = 'input window, operand 0']
    #allocation3 [shape = 's32[2]{0}', space=sflag, size = 0x8, scoped, tag = 'scoped memory for tpu_custom_call.1']
    #allocation4 [shape = 's32[2]{0}', space=sflag, size = 0x8, scoped, tag = 'scoped memory for tpu_custom_call.1']
    #allocation5 [shape = 'u8[65536]{0}', space=vmem, size = 0x10000, scoped, tag = 'input window, operand 1, single buffered']
    #allocation6 [shape = 's32[1]{0}', space=sflag, size = 0x4, scoped, tag = 'scoped memory for tpu_custom_call.1']
    #allocation7 [shape = 'u8[65536]{0}', space=vmem, size = 0x10000, scoped, tag = 'input window, operand 3, single buffered']
    #allocation8 [shape = 'u8[8192]{0}', space=vmem, size = 0x2000, scoped, tag = 'output window, operand 0']
    %12 = vsyncpa [#allocation3], 0
    %s13 = scalar_lea.sflag [#allocation3], 1
    %14 = vsyncpa %s13, 0
    %15 = vsyncpa [#allocation6], 0
    %16 = vsyncpa [#allocation4], 0
    %s17 = scalar_lea.sflag [#allocation4], 1
    %18 = vsyncpa %s17, 0
    loop: start=0, step=1, limit=6
    $region2: #{tpu_custom_call.1} parent=1 // loop_pre_header
      _
    $region3: #{tpu_custom_call.1} parent=1 // loop_header
      %s20 = sphi 0, %s24
      %p21 = scmp.ge.s32.totalorder %s20, 6
      %s30 = sphi 0, %s32
      %s33 = sphi 0, %s30
      %s34 = sphi 0, %s33
      %s50 = sphi 0, %s34
      %s54 = sphi 0, %s54
      %s56 = sphi 0, %s54
      %s57 = sphi 0, %s56
      %s71 = sphi 0, %s57
      %s75 = sphi 0, %s75
      %s77 = sphi 0, %s75
      %s78 = sphi 0, %s77
      %s92 = sphi 0, %s78
      %s96 = sphi 0, %s96
      %s98 = sphi 0, %s96
      %s99 = sphi 0, %s98
      %s113 = sphi 0, %s99
      %s117 = sphi 0, %s117
      %s119 = sphi 0, %s117
      %s120 = sphi 0, %s119
      %s134 = sphi 0, %s120
      %s138 = sphi 0, %s138
      %s140 = sphi 0, %s138
      %s141 = sphi 0, %s140
      %s155 = sphi 0, %s141
      %s159 = sphi 0, %s159
      %s161 = sphi 0, %s159
      %s162 = sphi 0, %s161
      %s176 = sphi 0, %s162
      %s182 = sphi 0, %s184
      %s185 = sphi 0, %s182
      %s186 = sphi 0, %s185
      %s202 = sphi 0, %s186
    $region4: #{tpu_custom_call.1} parent=1 // loop_header_branch
      %23 = sbr.rel (%p21) target = $region8
    $region5: #{tpu_custom_call.1} parent=1 // loop_body
      %s25 = ssub.s32 %s20, 1
      %s26 = ssub.s32 %s20, 2
      %s27 = sadd.s32 %s20, 1
      %s28 = ssub.s32 %s20, %s27
      %p29 = scmp.eq.s32.totalorder %s28, 0
      %s31 = sadd.s32 %s30, 1
      %s32 = scalar_select %p29, %s30, %s31
      %p35 = pneg %p29
      %p36 = scmp.eq.s32.totalorder %s20, 3
      %p37 = por %p35, %p36
      %p38 = scmp.ne.s32.totalorder %s30, %s33
      %p39 = scmp.eq.s32.totalorder %s20, 0
      %p40 = por %p38, %p39
      %p41 = scmp.ne.s32.totalorder %s30, %s33
      %p42 = scmp.eq.s32.totalorder %s25, 3
      %p43 = por %p41, %p42
      %p44 = scmp.ne.s32.totalorder %s33, %s34
      %p45 = scmp.eq.s32.totalorder %s25, 0
      %p46 = por %p44, %p45
      %p47 = scmp.ne.s32.totalorder %s33, %s34
      %p48 = scmp.eq.s32.totalorder %s26, 3
      %p49 = por %p47, %p48
      %p51 = scmp.ne.s32.totalorder %s34, %s50
      %p52 = scmp.eq.s32.totalorder %s26, 0
      %p53 = por %p51, %p52
      %s55 = sadd.s32 %s54, 1
      %p58 = scmp.eq.s32.totalorder %s20, 3
      %p59 = scmp.ne.s32.totalorder %s54, %s56
      %p60 = scmp.eq.s32.totalorder %s20, 0
      %p61 = por %p59, %p60
      %p62 = scmp.ne.s32.totalorder %s54, %s56
      %p63 = scmp.eq.s32.totalorder %s25, 3
      %p64 = por %p62, %p63
      %p65 = scmp.ne.s32.totalorder %s56, %s57
      %p66 = scmp.eq.s32.totalorder %s25, 0
      %p67 = por %p65, %p66
      %p68 = scmp.ne.s32.totalorder %s56, %s57
      %p69 = scmp.eq.s32.totalorder %s26, 3
      %p70 = por %p68, %p69
      %p72 = scmp.ne.s32.totalorder %s57, %s71
      %p73 = scmp.eq.s32.totalorder %s26, 0
      %p74 = por %p72, %p73
      %s76 = sadd.s32 %s75, 1
      %p79 = scmp.eq.s32.totalorder %s20, 3
      %p80 = scmp.ne.s32.totalorder %s75, %s77
      %p81 = scmp.eq.s32.totalorder %s20, 0
      %p82 = por %p80, %p81
      %p83 = scmp.ne.s32.totalorder %s75, %s77
      %p84 = scmp.eq.s32.totalorder %s25, 3
      %p85 = por %p83, %p84
      %p86 = scmp.ne.s32.totalorder %s77, %s78
      %p87 = scmp.eq.s32.totalorder %s25, 0
      %p88 = por %p86, %p87
      %p89 = scmp.ne.s32.totalorder %s77, %s78
      %p90 = scmp.eq.s32.totalorder %s26, 3
      %p91 = por %p89, %p90
      %p93 = scmp.ne.s32.totalorder %s78, %s92
      %p94 = scmp.eq.s32.totalorder %s26, 0
      %p95 = por %p93, %p94
      %s97 = sadd.s32 %s96, 1
      %p100 = scmp.eq.s32.totalorder %s20, 3
      %p101 = scmp.ne.s32.totalorder %s96, %s98
      %p102 = scmp.eq.s32.totalorder %s20, 0
      %p103 = por %p101, %p102
      %p104 = scmp.ne.s32.totalorder %s96, %s98
      %p105 = scmp.eq.s32.totalorder %s25, 3
      %p106 = por %p104, %p105
      %p107 = scmp.ne.s32.totalorder %s98, %s99
      %p108 = scmp.eq.s32.totalorder %s25, 0
      %p109 = por %p107, %p108
      %p110 = scmp.ne.s32.totalorder %s98, %s99
      %p111 = scmp.eq.s32.totalorder %s26, 3
      %p112 = por %p110, %p111
      %p114 = scmp.ne.s32.totalorder %s99, %s113
      %p115 = scmp.eq.s32.totalorder %s26, 0
      %p116 = por %p114, %p115
      %s118 = sadd.s32 %s117, 1
      %p121 = scmp.eq.s32.totalorder %s20, 3
      %p122 = scmp.ne.s32.totalorder %s117, %s119
      %p123 = scmp.eq.s32.totalorder %s20, 0
      %p124 = por %p122, %p123
      %p125 = scmp.ne.s32.totalorder %s117, %s119
      %p126 = scmp.eq.s32.totalorder %s25, 3
      %p127 = por %p125, %p126
      %p128 = scmp.ne.s32.totalorder %s119, %s120
      %p129 = scmp.eq.s32.totalorder %s25, 0
      %p130 = por %p128, %p129
      %p131 = scmp.ne.s32.totalorder %s119, %s120
      %p132 = scmp.eq.s32.totalorder %s26, 3
      %p133 = por %p131, %p132
      %p135 = scmp.ne.s32.totalorder %s120, %s134
      %p136 = scmp.eq.s32.totalorder %s26, 0
      %p137 = por %p135, %p136
      %s139 = sadd.s32 %s138, 1
      %p142 = scmp.eq.s32.totalorder %s20, 3
      %p143 = scmp.ne.s32.totalorder %s138, %s140
      %p144 = scmp.eq.s32.totalorder %s20, 0
      %p145 = por %p143, %p144
      %p146 = scmp.ne.s32.totalorder %s138, %s140
      %p147 = scmp.eq.s32.totalorder %s25, 3
      %p148 = por %p146, %p147
      %p149 = scmp.ne.s32.totalorder %s140, %s141
      %p150 = scmp.eq.s32.totalorder %s25, 0
      %p151 = por %p149, %p150
      %p152 = scmp.ne.s32.totalorder %s140, %s141
      %p153 = scmp.eq.s32.totalorder %s26, 3
      %p154 = por %p152, %p153
      %p156 = scmp.ne.s32.totalorder %s141, %s155
      %p157 = scmp.eq.s32.totalorder %s26, 0
      %p158 = por %p156, %p157
      %s160 = sadd.s32 %s159, 1
      %p163 = scmp.eq.s32.totalorder %s20, 3
      %p164 = scmp.ne.s32.totalorder %s159, %s161
      %p165 = scmp.eq.s32.totalorder %s20, 0
      %p166 = por %p164, %p165
      %p167 = scmp.ne.s32.totalorder %s159, %s161
      %p168 = scmp.eq.s32.totalorder %s25, 3
      %p169 = por %p167, %p168
      %p170 = scmp.ne.s32.totalorder %s161, %s162
      %p171 = scmp.eq.s32.totalorder %s25, 0
      %p172 = por %p170, %p171
      %p173 = scmp.ne.s32.totalorder %s161, %s162
      %p174 = scmp.eq.s32.totalorder %s26, 3
      %p175 = por %p173, %p174
      %p177 = scmp.ne.s32.totalorder %s162, %s176
      %p178 = scmp.eq.s32.totalorder %s26, 0
      %p179 = por %p177, %p178
      %s180 = ssub.s32 %s20, %s27
      %p181 = scmp.eq.s32.totalorder %s180, 0
      %s183 = sadd.s32 %s182, 1
      %s184 = scalar_select %p181, %s182, %s183
      %p187 = pneg %p181
      %p188 = scmp.eq.s32.totalorder %s20, 3
      %p189 = por %p187, %p188
      %p190 = scmp.ne.s32.totalorder %s182, %s185
      %p191 = scmp.eq.s32.totalorder %s20, 0
      %p192 = por %p190, %p191
      %p193 = scmp.ne.s32.totalorder %s182, %s185
      %p194 = scmp.eq.s32.totalorder %s25, 3
      %p195 = por %p193, %p194
      %p196 = scmp.ne.s32.totalorder %s185, %s186
      %p197 = scmp.eq.s32.totalorder %s25, 0
      %p198 = por %p196, %p197
      %p199 = scmp.ne.s32.totalorder %s185, %s186
      %p200 = scmp.eq.s32.totalorder %s26, 3
      %p201 = por %p199, %p200
      %p203 = scmp.ne.s32.totalorder %s186, %s202
      %p204 = scmp.eq.s32.totalorder %s26, 0
      %p205 = por %p203, %p204
      %p206 = scmp.le.s32.totalorder 1, %s20
      %p207 = scmp.lt.s32.totalorder %s20, 5
      %p208 = pnand %p206, %p207
      %p209 = pneg %p208
      // Predicated region
      $region9: #{tpu_custom_call.1} parent=5 // pred_check
        _
      $region10: #{tpu_custom_call.1} parent=5 // pred_check_branch
        %211 = sbr.rel (%p208) target = $region12
      $region11: #{tpu_custom_call.1} parent=5 // pred_region
        %s212 = ssub.s32 %s20, 1
        // Predicated region
        $region13: #{tpu_custom_call.1} parent=11 // pred_check
          %p213 = pneg %p67
        $region14: #{tpu_custom_call.1} parent=11 // pred_check_branch
          %215 = sbr.rel (%p213) target = $region16
        $region15: #{tpu_custom_call.1} parent=11 // pred_region
          %s217 = ssub.s32 2048, 2048
          %218 = vsyncadd [#allocation6], %s217
          %s219 = sshll.u32 [#allocation5], 4
          %s220 = int_to_ptr.vmem [resolvable:$true] %s219
          %225 = dma.hbm_to_vmem [thread:$0]  %s1, 2048, %s220, [#allocation6], 128, 128, 8
        $region16: #{tpu_custom_call.1} parent=11 // pred_fallthru
          _
        // Predicated region
        $region17: #{tpu_custom_call.1} parent=11 // pred_check
          %p226 = pneg %p88
        $region18: #{tpu_custom_call.1} parent=11 // pred_check_branch
          %228 = sbr.rel (%p226) target = $region20
        $region19: #{tpu_custom_call.1} parent=11 // pred_region
          _
        $region20: #{tpu_custom_call.1} parent=11 // pred_fallthru
          _
        // Predicated region
        $region21: #{tpu_custom_call.1} parent=11 // pred_check
          %p229 = pneg %p109
        $region22: #{tpu_custom_call.1} parent=11 // pred_check_branch
          %231 = sbr.rel (%p229) target = $region24
        $region23: #{tpu_custom_call.1} parent=11 // pred_region
          %s233 = ssub.s32 2048, 2048
          %234 = vsyncadd [#allocation6], %s233
          %s235 = sshll.u32 [#allocation7], 4
          %s236 = int_to_ptr.vmem [resolvable:$true] %s235
          %241 = dma.hbm_to_vmem [thread:$0]  %s3, 2048, %s236, [#allocation6], 64, 64, 4
        $region24: #{tpu_custom_call.1} parent=11 // pred_fallthru
          _
        // Predicated region
        $region25: #{tpu_custom_call.1} parent=11 // pred_check
          %p242 = pneg %p130
        $region26: #{tpu_custom_call.1} parent=11 // pred_check_branch
          %244 = sbr.rel (%p242) target = $region28
        $region27: #{tpu_custom_call.1} parent=11 // pred_region
          _
        $region28: #{tpu_custom_call.1} parent=11 // pred_fallthru
          _
        // Predicated region
        $region29: #{tpu_custom_call.1} parent=11 // pred_check
          %p245 = pneg %p151
        $region30: #{tpu_custom_call.1} parent=11 // pred_check_branch
          %247 = sbr.rel (%p245) target = $region32
        $region31: #{tpu_custom_call.1} parent=11 // pred_region
          _
        $region32: #{tpu_custom_call.1} parent=11 // pred_fallthru
          _
        // Predicated region
        $region33: #{tpu_custom_call.1} parent=11 // pred_check
          %p248 = pneg %p172
        $region34: #{tpu_custom_call.1} parent=11 // pred_check_branch
          %250 = sbr.rel (%p248) target = $region36
        $region35: #{tpu_custom_call.1} parent=11 // pred_region
          _
        $region36: #{tpu_custom_call.1} parent=11 // pred_fallthru
          _
      $region12: #{tpu_custom_call.1} parent=5 // pred_fallthru
        _
      %p251 = scmp.lt.s32.totalorder %s20, 4
      // Predicated region
      $region37: #{tpu_custom_call.1} parent=5 // pred_check
        %p252 = pneg %p251
      $region38: #{tpu_custom_call.1} parent=5 // pred_check_branch
        %254 = sbr.rel (%p252) target = $region40
      $region39: #{tpu_custom_call.1} parent=5 // pred_region
        // Predicated region
        $region41: #{tpu_custom_call.1} parent=39 // pred_check
          %p255 = pneg %p40
        $region42: #{tpu_custom_call.1} parent=39 // pred_check_branch
          %257 = sbr.rel (%p255) target = $region44
        $region43: #{tpu_custom_call.1} parent=39 // pred_region
          %s258 = sand.u32 %s30, 1
          %s259 = scalar_lea.sflag [#allocation3], %s258
          %s260 = sand.u32 %s30, 1
          %s261 = smul.addr %s260, 8
          %s262 = scalar_lea.vmem [#allocation2], %s261
          %s264 = ssub.s32 128, 128
          %265 = vsyncadd %s259, %s264
          %s266 = smul.addr %s20, 128
          %s267 = scalar_lea.hbm %s0, %s266
          %s269 = sshll.u32 %s262, 4
          %s270 = int_to_ptr.vmem [resolvable:$true] %s269
          %272 = dma.hbm_to_vmem [thread:$0]  %s267, 128, %s270, %s259
        $region44: #{tpu_custom_call.1} parent=39 // pred_fallthru
          _
      $region40: #{tpu_custom_call.1} parent=5 // pred_fallthru
        _
      %p273 = scmp.le.s32.totalorder 1, %s20
      %p274 = scmp.lt.s32.totalorder %s20, 5
      %p275 = pnand %p273, %p274
      %p276 = pneg %p275
      // Predicated region
      $region45: #{tpu_custom_call.1} parent=5 // pred_check
        _
      $region46: #{tpu_custom_call.1} parent=5 // pred_check_branch
        %278 = sbr.rel (%p275) target = $region48
      $region47: #{tpu_custom_call.1} parent=5 // pred_region
        %s279 = ssub.s32 %s20, 1
        %s280 = sand.u32 %s33, 1
        %s281 = scalar_lea.sflag [#allocation3], %s280
        %s282 = sand.u32 %s33, 1
        %s283 = smul.addr %s282, 8
        %s284 = scalar_lea.vmem [#allocation2], %s283
        // Predicated region
        $region49: #{tpu_custom_call.1} parent=47 // pred_check
          %p285 = pneg %p46
        $region50: #{tpu_custom_call.1} parent=47 // pred_check_branch
          %287 = sbr.rel (%p285) target = $region52
        $region51: #{tpu_custom_call.1} parent=47 // pred_region
          %288 = dma.done %s281, 128
        $region52: #{tpu_custom_call.1} parent=47 // pred_fallthru
          _
        // Predicated region
        $region53: #{tpu_custom_call.1} parent=47 // pred_check
          %p289 = pneg %p67
        $region54: #{tpu_custom_call.1} parent=47 // pred_check_branch
          %291 = sbr.rel (%p289) target = $region56
        $region55: #{tpu_custom_call.1} parent=47 // pred_region
          %292 = dma.done [#allocation6], 2048
        $region56: #{tpu_custom_call.1} parent=47 // pred_fallthru
          _
        // Predicated region
        $region57: #{tpu_custom_call.1} parent=47 // pred_check
          %p293 = pneg %p109
        $region58: #{tpu_custom_call.1} parent=47 // pred_check_branch
          %295 = sbr.rel (%p293) target = $region60
        $region59: #{tpu_custom_call.1} parent=47 // pred_region
          %296 = dma.done [#allocation6], 2048
        $region60: #{tpu_custom_call.1} parent=47 // pred_fallthru
          _
        %s297 = sand.u32 %s33, 1
        %s298 = scalar_lea.sflag [#allocation3], %s297
        %s299 = sand.u32 %s33, 1
        %s300 = smul.addr %s299, 8
        %s301 = scalar_lea.vmem [#allocation2], %s300
        %p302 = pneg %p46
        %p303 = pneg %p43
        %p304 = pneg %p67
        %p305 = pneg %p64
        %p306 = pneg %p88
        %p307 = pneg %p85
        %p308 = pneg %p109
        %p309 = pneg %p106
        %p310 = pneg %p130
        %p311 = pneg %p127
        %p312 = pneg %p151
        %p313 = pneg %p148
        %p314 = pneg %p172
        %p315 = pneg %p169
        %p316 = pneg %p198
        %p317 = pneg %p195
        %s318 = sand.u32 %s185, 1
        %s319 = scalar_lea.sflag [#allocation4], %s318
        %s320 = sand.u32 %s185, 1
        %s321 = smul.addr %s320, 8
        %s322 = scalar_lea.vmem [#allocation8], %s321
        %v324 = vld [vmem:[%s284] sm:$0xff]
        %v325 = vpack.c.bf16 %v324, %v324
        %v326 = vld [vmem:[#allocation5] sm:$0xff]
        %v327 = vld [vmem:[#allocation5 + $0x8] sm:$0xff]
        %v328 = vld [vmem:[#allocation5 + $0x10] sm:$0xff]
        %v329 = vld [vmem:[#allocation5 + $0x18] sm:$0xff]
        %v330 = vld [vmem:[#allocation5 + $0x20] sm:$0xff]
        %v331 = vld [vmem:[#allocation5 + $0x28] sm:$0xff]
        %v332 = vld [vmem:[#allocation5 + $0x30] sm:$0xff]
        %v333 = vld [vmem:[#allocation5 + $0x38] sm:$0xff]
        %v334 = vld [vmem:[#allocation5 + $0x40] sm:$0xff]
        %v335 = vld [vmem:[#allocation5 + $0x48] sm:$0xff]
        %v336 = vld [vmem:[#allocation5 + $0x50] sm:$0xff]
        %v337 = vld [vmem:[#allocation5 + $0x58] sm:$0xff]
        %v338 = vld [vmem:[#allocation5 + $0x60] sm:$0xff]
        %v339 = vld [vmem:[#allocation5 + $0x68] sm:$0xff]
        %v340 = vld [vmem:[#allocation5 + $0x70] sm:$0xff]
        %v341 = vld [vmem:[#allocation5 + $0x78] sm:$0xff]
        %v342 = vld [vmem:[%s2] sm:$0x3]
        %v344 = vlaneseq
        %v345 = vshrl.u32 %v344, 7
        %v346 = vsub.s32 0, %v345
        %v347 = vrot.slane %v342, %v346
        %v348 = vlaneseq
        %v349 = vshrl.u32 %v348, 7
        %v350 = vsub.s32 1, %v349
        %v351 = vrot.slane %v342, %v350
        %v370 = vunpack.c.l.b16 %v326
        %v371 = vunpack.c.h.b16 %v326
        %v372 = vunpack.c.l.b16 %v327
        %v373 = vunpack.c.h.b16 %v327
        %v374 = vunpack.c.l.b16 %v328
        %v375 = vunpack.c.h.b16 %v328
        %v376 = vunpack.c.l.b16 %v329
        %v377 = vunpack.c.h.b16 %v329
        %v378 = vunpack.c.l.b16 %v330
        %v379 = vunpack.c.h.b16 %v330
        %v380 = vunpack.c.l.b16 %v331
        %v381 = vunpack.c.h.b16 %v331
        %v382 = vunpack.c.l.b16 %v332
        %v383 = vunpack.c.h.b16 %v332
        %v384 = vunpack.c.l.b16 %v333
        %v385 = vunpack.c.h.b16 %v333
        %v386 = vunpack.c.l.b16 %v334
        %v387 = vunpack.c.h.b16 %v334
        %v388 = vunpack.c.l.b16 %v335
        %v389 = vunpack.c.h.b16 %v335
        %v390 = vunpack.c.l.b16 %v336
        %v391 = vunpack.c.h.b16 %v336
        %v392 = vunpack.c.l.b16 %v337
        %v393 = vunpack.c.h.b16 %v337
        %v394 = vunpack.c.l.b16 %v338
        %v395 = vunpack.c.h.b16 %v338
        %v396 = vunpack.c.l.b16 %v339
        %v397 = vunpack.c.h.b16 %v339
        %v398 = vunpack.c.l.b16 %v340
        %v399 = vunpack.c.h.b16 %v340
        %v400 = vunpack.c.l.b16 %v341
        %v401 = vunpack.c.h.b16 %v341
        %v402 = vpack.c.b16 %v372, %v370
        %v403 = vpack.c.b16 %v373, %v371
        %v404 = vpack.c.b16 %v376, %v374
        %v405 = vpack.c.b16 %v377, %v375
        %v406 = vpack.c.b16 %v380, %v378
        %v407 = vpack.c.b16 %v381, %v379
        %v408 = vpack.c.b16 %v384, %v382
        %v409 = vpack.c.b16 %v385, %v383
        %v410 = vpack.c.b16 %v388, %v386
        %v411 = vpack.c.b16 %v389, %v387
        %v412 = vpack.c.b16 %v392, %v390
        %v413 = vpack.c.b16 %v393, %v391
        %v414 = vpack.c.b16 %v396, %v394
        %v415 = vpack.c.b16 %v397, %v395
        %v416 = vpack.c.b16 %v400, %v398
        %v417 = vpack.c.b16 %v401, %v399
        %434 = vmatprep.subr.bf16.mxu0 %v403
        %435 = vmatpush1.bf16.msra.mxu0 %v402
        %436 = vmatprep.subr.bf16.mxu0 %v405
        %437 = vmatpush1.bf16.msra.mxu0 %v404
        %438 = vmatprep.subr.bf16.mxu0 %v407
        %439 = vmatpush1.bf16.msra.mxu0 %v406
        %440 = vmatprep.subr.bf16.mxu0 %v409
        %441 = vmatpush1.bf16.msra.mxu0 %v408
        %442 = vmatprep.subr.bf16.mxu0 %v411
        %443 = vmatpush1.bf16.msra.mxu0 %v410
        %444 = vmatprep.subr.bf16.mxu0 %v413
        %445 = vmatpush1.bf16.msra.mxu0 %v412
        %446 = vmatprep.subr.bf16.mxu0 %v415
        %447 = vmatpush1.bf16.msra.mxu0 %v414
        %448 = vmatprep.subr.bf16.mxu0 %v417
        %449 = vmatpush1.bf16.msra.mxu0 %v416
        %450 = vmatprep.subr.bf16.mxu0 0
        %451 = vmatpush1.bf16.msra.mxu0 0
        %452 = vmatprep.subr.bf16.mxu0 0
        %453 = vmatpush1.bf16.msra.mxu0 0
        %454 = vmatprep.subr.bf16.mxu0 0
        %455 = vmatpush1.bf16.msra.mxu0 0
        %456 = vmatprep.subr.bf16.mxu0 0
        %457 = vmatpush1.bf16.msra.mxu0 0
        %458 = vmatprep.subr.bf16.mxu0 0
        %459 = vmatpush1.bf16.msra.mxu0 0
        %460 = vmatprep.subr.bf16.mxu0 0
        %461 = vmatpush1.bf16.msra.mxu0 0
        %462 = vmatprep.subr.bf16.mxu0 0
        %463 = vmatpush1.bf16.msra.mxu0 0
        %464 = vmatprep.subr.bf16.mxu0 0
        %465 = vmatpush1.bf16.msra.mxu0 0
        %466 = vmatprep.mubr.bf16.mxu0 0
        %467 = vmatmul.mubr.bf16.gmra.mrb[0].mxu0 %v325
        %v468 = vpop.f32.mrb[0].mxu0
        %v469 = vadd.f32 %v347, %v468
        %v470 = vpop.f32.mrb[0].mxu0
        %v471 = vadd.f32 %v351, %v470
        %v472 = vpop.f32.mrb[0].mxu0
        %v473 = vpop.f32.mrb[0].mxu0
        %474 = vdwg.mxu0
        %v475 = vmax.f32 %v469, 0.0
        %v476 = vmax.f32 %v471, 0.0
        %v477 = vadd.f32 %v475, %v476
        %478 = vadd.xlane.f32.xlu0 %v477
        %v479 = vpop.xlane.xlu0 %478
        %v480 = vmul.f32 %v475, %v475
        %v481 = vmul.f32 %v476, %v476
        %v482 = vadd.f32 %v480, %v481
        %483 = vadd.xlane.f32.xlu0 %v482
        %v484 = vpop.xlane.xlu0 %483
        %v485 = vmul.f32 %v479, 0.00390625
        %v486 = vmul.f32 %v484, 0.00390625
        %v487 = vmul.f32 %v485, %v485
        %v488 = vsub.f32 %v486, %v487
        %v489 = vsub.f32 %v475, %v485
        %v490 = vsub.f32 %v476, %v485
        %v491 = vadd.f32 %v488, 1e-05
        %v492 = vrsqrt.pop %v491
        %v493 = vmul.f32 %v489, %v492
        %v494 = vmul.f32 %v490, %v492
        %v495 = vpack.c.bf16 %v493, %v493
        %v496 = vpack.c.bf16 %v494, %v494
        %v497 = vld [vmem:[#allocation7] sm:$0xf]
        %v498 = vld [vmem:[#allocation7 + $0x4] sm:$0xf]
        %v499 = vld [vmem:[#allocation7 + $0x8] sm:$0xf]
        %v500 = vld [vmem:[#allocation7 + $0xc] sm:$0xf]
        %v501 = vld [vmem:[#allocation7 + $0x10] sm:$0xf]
        %v502 = vld [vmem:[#allocation7 + $0x14] sm:$0xf]
        %v503 = vld [vmem:[#allocation7 + $0x18] sm:$0xf]
        %v504 = vld [vmem:[#allocation7 + $0x1c] sm:$0xf]
        %v505 = vld [vmem:[#allocation7 + $0x20] sm:$0xf]
        %v506 = vld [vmem:[#allocation7 + $0x24] sm:$0xf]
        %v507 = vld [vmem:[#allocation7 + $0x28] sm:$0xf]
        %v508 = vld [vmem:[#allocation7 + $0x2c] sm:$0xf]
        %v509 = vld [vmem:[#allocation7 + $0x30] sm:$0xf]
        %v510 = vld [vmem:[#allocation7 + $0x34] sm:$0xf]
        %v511 = vld [vmem:[#allocation7 + $0x38] sm:$0xf]
        %v512 = vld [vmem:[#allocation7 + $0x3c] sm:$0xf]
        %v513 = vld [vmem:[#allocation7 + $0x40] sm:$0xf]
        %v514 = vld [vmem:[#allocation7 + $0x44] sm:$0xf]
        %v515 = vld [vmem:[#allocation7 + $0x48] sm:$0xf]
        %v516 = vld [vmem:[#allocation7 + $0x4c] sm:$0xf]
        %v517 = vld [vmem:[#allocation7 + $0x50] sm:$0xf]
        %v518 = vld [vmem:[#allocation7 + $0x54] sm:$0xf]
        %v519 = vld [vmem:[#allocation7 + $0x58] sm:$0xf]
        %v520 = vld [vmem:[#allocation7 + $0x5c] sm:$0xf]
        %v521 = vld [vmem:[#allocation7 + $0x60] sm:$0xf]
        %v522 = vld [vmem:[#allocation7 + $0x64] sm:$0xf]
        %v523 = vld [vmem:[#allocation7 + $0x68] sm:$0xf]
        %v524 = vld [vmem:[#allocation7 + $0x6c] sm:$0xf]
        %v525 = vld [vmem:[#allocation7 + $0x70] sm:$0xf]
        %v526 = vld [vmem:[#allocation7 + $0x74] sm:$0xf]
        %v527 = vld [vmem:[#allocation7 + $0x78] sm:$0xf]
        %v528 = vld [vmem:[#allocation7 + $0x7c] sm:$0xf]
        %v529 = vld [vmem:[%s4] sm:$0x1]
        %v531 = vlaneseq
        %v532 = vshrl.u32 %v531, 7
        %v533 = vsub.s32 0, %v532
        %v534 = vrot.slane %v529, %v533
        %v568 = vunpack.c.l.b16 %v497
        %v569 = vunpack.c.l.b16 %v498
        %v570 = vunpack.c.l.b16 %v499
        %v571 = vunpack.c.l.b16 %v500
        %v572 = vunpack.c.l.b16 %v501
        %v573 = vunpack.c.l.b16 %v502
        %v574 = vunpack.c.l.b16 %v503
        %v575 = vunpack.c.l.b16 %v504
        %v576 = vunpack.c.l.b16 %v505
        %v577 = vunpack.c.l.b16 %v506
        %v578 = vunpack.c.l.b16 %v507
        %v579 = vunpack.c.l.b16 %v508
        %v580 = vunpack.c.l.b16 %v509
        %v581 = vunpack.c.l.b16 %v510
        %v582 = vunpack.c.l.b16 %v511
        %v583 = vunpack.c.l.b16 %v512
        %v584 = vunpack.c.l.b16 %v513
        %v585 = vunpack.c.l.b16 %v514
        %v586 = vunpack.c.l.b16 %v515
        %v587 = vunpack.c.l.b16 %v516
        %v588 = vunpack.c.l.b16 %v517
        %v589 = vunpack.c.l.b16 %v518
        %v590 = vunpack.c.l.b16 %v519
        %v591 = vunpack.c.l.b16 %v520
        %v592 = vunpack.c.l.b16 %v521
        %v593 = vunpack.c.l.b16 %v522
        %v594 = vunpack.c.l.b16 %v523
        %v595 = vunpack.c.l.b16 %v524
        %v596 = vunpack.c.l.b16 %v525
        %v597 = vunpack.c.l.b16 %v526
        %v598 = vunpack.c.l.b16 %v527
        %v599 = vunpack.c.l.b16 %v528
        %v600 = vpack.c.b16 %v569, %v568
        %v601 = vpack.c.b16 %v571, %v570
        %v602 = vpack.c.b16 %v573, %v572
        %v603 = vpack.c.b16 %v575, %v574
        %v604 = vpack.c.b16 %v577, %v576
        %v605 = vpack.c.b16 %v579, %v578
        %v606 = vpack.c.b16 %v581, %v580
        %v607 = vpack.c.b16 %v583, %v582
        %v608 = vpack.c.b16 %v585, %v584
        %v609 = vpack.c.b16 %v587, %v586
        %v610 = vpack.c.b16 %v589, %v588
        %v611 = vpack.c.b16 %v591, %v590
        %v612 = vpack.c.b16 %v593, %v592
        %v613 = vpack.c.b16 %v595, %v594
        %v614 = vpack.c.b16 %v597, %v596
        %v615 = vpack.c.b16 %v599, %v598
        %632 = vmatprep.subr.bf16.mxu0 0
        %633 = vmatpush1.bf16.msra.mxu0 %v600
        %634 = vmatprep.subr.bf16.mxu0 0
        %635 = vmatpush1.bf16.msra.mxu0 %v601
        %636 = vmatprep.subr.bf16.mxu0 0
        %637 = vmatpush1.bf16.msra.mxu0 %v602
        %638 = vmatprep.subr.bf16.mxu0 0
        %639 = vmatpush1.bf16.msra.mxu0 %v603
        %640 = vmatprep.subr.bf16.mxu0 0
        %641 = vmatpush1.bf16.msra.mxu0 %v604
        %642 = vmatprep.subr.bf16.mxu0 0
        %643 = vmatpush1.bf16.msra.mxu0 %v605
        %644 = vmatprep.subr.bf16.mxu0 0
        %645 = vmatpush1.bf16.msra.mxu0 %v606
        %646 = vmatprep.subr.bf16.mxu0 0
        %647 = vmatpush1.bf16.msra.mxu0 %v607
        %648 = vmatprep.subr.bf16.mxu0 0
        %649 = vmatpush1.bf16.msra.mxu0 %v608
        %650 = vmatprep.subr.bf16.mxu0 0
        %651 = vmatpush1.bf16.msra.mxu0 %v609
        %652 = vmatprep.subr.bf16.mxu0 0
        %653 = vmatpush1.bf16.msra.mxu0 %v610
        %654 = vmatprep.subr.bf16.mxu0 0
        %655 = vmatpush1.bf16.msra.mxu0 %v611
        %656 = vmatprep.subr.bf16.mxu0 0
        %657 = vmatpush1.bf16.msra.mxu0 %v612
        %658 = vmatprep.subr.bf16.mxu0 0
        %659 = vmatpush1.bf16.msra.mxu0 %v613
        %660 = vmatprep.subr.bf16.mxu0 0
        %661 = vmatpush1.bf16.msra.mxu0 %v614
        %662 = vmatprep.subr.bf16.mxu0 0
        %663 = vmatpush1.bf16.msra.mxu0 %v615
        %664 = vmatprep.mubr.bf16.mxu0 %v496
        %665 = vmatmul.mubr.bf16.gmra.mrb[0].mxu0 %v495
        %v666 = vpop.f32.mrb[0].mxu0
        %v667 = vadd.f32 %v534, %v666
        %v668 = vpop.f32.mrb[0].mxu0
        %v669 = vpop.f32.mrb[0].mxu0
        %v670 = vpop.f32.mrb[0].mxu0
        %671 = vdwg.mxu0
        %672 = vadd.xlane.f32.xlu0 %v667
        %v673 = vpop.xlane.xlu0 %672
        %v674 = vmul.f32 %v667, %v667
        %675 = vadd.xlane.f32.xlu0 %v674
        %v676 = vpop.xlane.xlu0 %675
        %v677 = vmul.f32 %v673, 0.0078125
        %v678 = vmul.f32 %v676, 0.0078125
        %v679 = vmul.f32 %v677, %v677
        %v680 = vsub.f32 %v678, %v679
        %v681 = vsub.f32 %v667, %v677
        %v682 = vadd.f32 %v680, 1e-05
        %v683 = vrsqrt.pop %v682
        %v684 = vmul.f32 %v681, %v683
        %v685 = vld [vmem:[%s5] sm:$0x1]
        %v687 = vlaneseq
        %v688 = vshrl.u32 %v687, 7
        %v689 = vsub.s32 0, %v688
        %v690 = vrot.slane %v685, %v689
        %v692 = vmul.f32 %v684, %v690
        %v693 = vld [vmem:[%s6] sm:$0x1]
        %v695 = vlaneseq
        %v696 = vshrl.u32 %v695, 7
        %v697 = vsub.s32 0, %v696
        %v698 = vrot.slane %v693, %v697
        %v700 = vadd.f32 %v692, %v698
        %v701 = vadd.f32 %v324, %v700
        %702 = vst [vmem:[%s322] sm:$0xff] %v701
        %s703 = sand.u32 %s185, 1
        %s704 = scalar_lea.sflag [#allocation4], %s703
        %s705 = sand.u32 %s185, 1
        %s706 = smul.addr %s705, 8
        %s707 = scalar_lea.vmem [#allocation8], %s706
        // Predicated region
        $region61: #{tpu_custom_call.1} parent=47 // pred_check
          %p708 = pneg %p195
        $region62: #{tpu_custom_call.1} parent=47 // pred_check_branch
          %710 = sbr.rel (%p708) target = $region64
        $region63: #{tpu_custom_call.1} parent=47 // pred_region
          %s712 = ssub.s32 128, 128
          %713 = vsyncadd %s704, %s712
          %s714 = smul.addr %s25, 128
          %s715 = scalar_lea.hbm %s7, %s714
          %s717 = sshll.u32 %s707, 4
          %s718 = int_to_ptr.vmem [resolvable:$true] %s717
          %720 = dma.vmem_to_hbm [thread:$0]  %s718, 128, %s715, %s704
        $region64: #{tpu_custom_call.1} parent=47 // pred_fallthru
          _
      $region48: #{tpu_custom_call.1} parent=5 // pred_fallthru
        _
      %p721 = scmp.le.s32.totalorder 2, %s20
      // Predicated region
      $region65: #{tpu_custom_call.1} parent=5 // pred_check
        %p722 = pneg %p721
      $region66: #{tpu_custom_call.1} parent=5 // pred_check_branch
        %724 = sbr.rel (%p722) target = $region68
      $region67: #{tpu_custom_call.1} parent=5 // pred_region
        %s725 = ssub.s32 %s20, 2
        // Predicated region
        $region69: #{tpu_custom_call.1} parent=67 // pred_check
          %p726 = pneg %p201
        $region70: #{tpu_custom_call.1} parent=67 // pred_check_branch
          %728 = sbr.rel (%p726) target = $region72
        $region71: #{tpu_custom_call.1} parent=67 // pred_region
          %s729 = sand.u32 %s186, 1
          %s730 = scalar_lea.sflag [#allocation4], %s729
          %s731 = sand.u32 %s186, 1
          %s732 = smul.addr %s731, 8
          %s733 = scalar_lea.vmem [#allocation8], %s732
          %734 = dma.done %s730, 128
        $region72: #{tpu_custom_call.1} parent=67 // pred_fallthru
          _
      $region68: #{tpu_custom_call.1} parent=5 // pred_fallthru
        _
    $region6: #{tpu_custom_call.1} parent=1 // loop_footer
      %s24 = sadd.s32 1, %s20
    $region7: #{tpu_custom_call.1} parent=1 // loop_footer_branch
      %19 = sbr.rel target = $region3
    $region8: #{tpu_custom_call.1} parent=1 // loop_exit
      _
    %735 = vsyncpa [#allocation3], 1
    %s736 = scalar_lea.sflag [#allocation3], 1
    %737 = vsyncpa %s736, 1
    %738 = vsyncpa [#allocation6], 1
    %739 = vsyncpa [#allocation4], 1
    %s740 = scalar_lea.sflag [#allocation4], 1
    %741 = vsyncpa %s740, 1

</llo_original>
